<compile_context>
chip_gen: v7x
topology: tpu7x:2x2x1
jax: 0.10.0
libtpu: 0.0.40
codegen_flags: <defaults>
</compile_context>

<pallas_src>
import functools

import jax
import jax.numpy as jnp
from jax.experimental import pallas as pl
from jax.experimental.pallas import tpu as pltpu

LN_EPS = 1e-5      # torch.nn.LayerNorm default
_LANES = 128       # TPU vreg lane width


def _cdiv(a, b):
    return -(-a // b)


def _round_up(a, b):
    return _cdiv(a, b) * b


def _ln_rowwise_kernel(x_ref, gamma_ref, beta_ref, o_ref):
    """One logical row per physical row (D >= 128, or D < 128 non-divisor)."""
    x = x_ref[...].astype(jnp.float32)
    mean = jnp.mean(x, axis=-1, keepdims=True)
    xc = x - mean
    var = jnp.mean(xc * xc, axis=-1, keepdims=True)
    inv = jax.lax.rsqrt(var + LN_EPS)                     # EUP slot
    o_ref[...] = (xc * inv * gamma_ref[...] + beta_ref[...]).astype(o_ref.dtype)


def _ln_packed_kernel(x_ref, gamma_ref, beta_ref, seg_ref, o_ref):
    """G = 128 // D logical rows packed into each 128-lane physical row.

    Per-row mean / variance are segmented lane reductions, done on the idle
    MXU with a resident (Dp, Dp) block-diagonal matrix whose entries are 1/D
    (a power of two, exact), so every lane receives its own row's mean and
    E[(x-mean)^2] directly.  This replaces the earlier lane-rotate butterfly,
    which became the binding XLU slot on v7x once tiles stream at 3.2 TB/s.
    f32 accumulation + HIGHEST precision keep the stats at f32 accuracy.
    """
    x = x_ref[...].astype(jnp.float32)
    m = seg_ref[...]                                      # (Dp, Dp), 1/D block-diag
    mean = jnp.dot(x, m, preferred_element_type=jnp.float32,
                   precision=jax.lax.Precision.HIGHEST)
    xc = x - mean
    var = jnp.dot(xc * xc, m, preferred_element_type=jnp.float32,
                  precision=jax.lax.Precision.HIGHEST)
    inv = jax.lax.rsqrt(var + LN_EPS)
    o_ref[...] = (xc * inv * gamma_ref[...] + beta_ref[...]).astype(o_ref.dtype)


def _run_layernorm(x2d, gamma_row, beta_row, seg_mat, *,
                   vmem_budget_bytes, vmem_limit_bytes):
    """Tiled LayerNorm over a (rows, Dp) lane-dense matrix."""
    rows, dp = x2d.shape
    itemsize = jnp.dtype(x2d.dtype).itemsize
    sub = {4: 8, 2: 16, 1: 32}.get(itemsize, 8)           # sublane packing

    # Row tile sized from the VMEM budget: 2 in + 2 out pipeline buffers in the
    # input dtype plus ~5 f32 in-kernel temporaries (x, mean, xc, var, y).
    # 24 MiB budget -> ~2.7 MiB tiles for Dp=128 f32; the (Dp, Dp) seg matrix
    # adds only 64 KiB.  Safe within v7x's 64 MiB physical VMEM.
    per_row_bytes = dp * (4 * itemsize + 5 * 4)
    tm_cap = max(sub, (vmem_budget_bytes // per_row_bytes) // sub * sub)
    # Keep >= 2 grid steps when there is enough work, so v7x megacore (2 TCs)
    # and the DMA pipeline both have something to overlap.
    tm_target = max(sub, _round_up(_cdiv(rows, 2), sub))
    tm = min(tm_cap, tm_target)
    grid = _cdiv(rows, tm)        # partial last block: Mosaic masks the DMA

    in_specs = [
        pl.BlockSpec((tm, dp), lambda i: (i, 0)),         # row tile (streamed)
        pl.BlockSpec((1, dp), lambda i: (0, 0)),          # gamma (resident)
        pl.BlockSpec((1, dp), lambda i: (0, 0)),          # beta  (resident)
    ]
    args = [x2d, gamma_row, beta_row]
    if seg_mat is None:
        kernel = _ln_rowwise_kernel
    else:
        kernel = _ln_packed_kernel
        in_specs.append(pl.BlockSpec((dp, dp), lambda i: (0, 0)))  # resident
        args.append(seg_mat)

    return pl.pallas_call(
        kernel,
        out_shape=jax.ShapeDtypeStruct((rows, dp), x2d.dtype),
        grid_spec=pltpu.PrefetchScalarGridSpec(
            num_scalar_prefetch=0,
            grid=(grid,),
            in_specs=in_specs,
            out_specs=pl.BlockSpec((tm, dp), lambda i: (i, 0)),
        ),
        compiler_params=pltpu.CompilerParams(
            dimension_semantics=("parallel",),            # v7x: shard across TCs
            vmem_limit_bytes=vmem_limit_bytes,            # <= 64 MiB physical (v7x)
        ),
    )(*args)


def _dense_layernorm(x, gamma, beta):
    """Plain-JAX LayerNorm (reference + tiny <G-row tail fallback)."""
    xf = x.astype(jnp.float32)
    mean = jnp.mean(xf, axis=-1, keepdims=True)
    var = jnp.mean((xf - mean) ** 2, axis=-1, keepdims=True)
    y = (xf - mean) * jax.lax.rsqrt(var + LN_EPS) * gamma + beta
    return y.astype(x.dtype)


def identity_norm_layer(x, gamma, beta, *,
                        vmem_budget_bytes=24 * 1024 * 1024,
                        vmem_limit_bytes=48 * 1024 * 1024):
    """LayerNorm over the last dim of x (N, D), matching torch.nn.LayerNorm(D)."""
    N, D = x.shape
    if N == 0:
        return x
    gamma_row = gamma.astype(jnp.float32).reshape(1, D)
    beta_row = beta.astype(jnp.float32).reshape(1, D)

    # Lane-dense packing: fold G = 128 // D small rows into each 128-lane row
    # (free contiguous reshape) so loads/stores are full-lane vld/vst.
    if D < _LANES and _LANES % D == 0 and N >= _LANES // D:
        G = _LANES // D
    else:
        # D >= 128, or D < 128 with 128 % D != 0 (e.g. D=96): one logical row
        # per physical row.  For the non-divisor D < 128 case the output
        # stores are masked (vst.msk) and waste some write bandwidth; the only
        # zero-copy alternative (padding the feature dim) would cost an extra
        # full HBM pass, so the masked stores are the lesser evil.
        G = 1

    if G == 1:
        return _run_layernorm(x, gamma_row, beta_row, None,
                              vmem_budget_bytes=vmem_budget_bytes,
                              vmem_limit_bytes=vmem_limit_bytes)

    Dp = G * D
    gamma_p = jnp.tile(gamma_row, (1, G))
    beta_p = jnp.tile(beta_row, (1, G))
    seg_id = jnp.arange(Dp, dtype=jnp.int32) // D
    # Block-diagonal segmented-mean matrix; entries 1/D (power of two, exact).
    seg_mat = (seg_id[:, None] == seg_id[None, :]).astype(jnp.float32) * (1.0 / D)

    # No whole-array pad/slice: run the kernel on the largest G-aligned prefix
    # (almost always all of x); the < G leftover rows, if any, go through
    # plain jnp.
    n_main = (N // G) * G
    x_main = x if n_main == N else x[:n_main]
    out = _run_layernorm(x_main.reshape(n_main // G, Dp), gamma_p, beta_p,
                         seg_mat,
                         vmem_budget_bytes=vmem_budget_bytes,
                         vmem_limit_bytes=vmem_limit_bytes)
    out = out.reshape(n_main, D)
    if n_main == N:
        return out
    tail = _dense_layernorm(x[n_main:], gamma_row, beta_row)
    return jnp.concatenate([out, tail], axis=0)


if __name__ == "__main__":
    # TODO(synk): the DGL block container access (b.srcdata['h']) has no Pallas
    # equivalent; the kernel consumes the dense node-feature matrix directly.
    key = jax.random.PRNGKey(0)
    k1, k2, k3 = jax.random.split(key, 3)

    def check(x, gamma, beta, tag):
        out = jax.block_until_ready(identity_norm_layer(x, gamma, beta))
        ref = _dense_layernorm(x, gamma, beta)
        assert out.shape == x.shape, tag
        assert jnp.allclose(out, ref, atol=1e-5, rtol=1e-5), f"mismatch ({tag})"

    D = 32                                               # dim_out (toy size)
    gamma = jnp.ones((D,), jnp.float32)                  # torch LayerNorm weight init
    beta = jnp.zeros((D,), jnp.float32)                  # torch LayerNorm bias init

    # Packed small-D path (G = 4 logical rows per 128-lane row), N % G == 0.
    check(jax.random.normal(k1, (64, D), jnp.float32), gamma, beta, "packed")

    # Ragged node count: partial last grid block + <G-row jnp tail, no pad copy.
    check(jax.random.normal(k2, (37, D), jnp.float32), gamma, beta, "ragged")

    # Full-lane-row path (D = 128), partial last grid block.
    D2 = 128
    check(jax.random.normal(k3, (40, D2), jnp.float32),
          jnp.ones((D2,), jnp.float32), jnp.zeros((D2,), jnp.float32), "rowwise")

    print("KERNEL_OK")
</pallas_src>

<mosaic_0001>
module attributes {stable_mosaic.version = 11 : i64} {
  func.func @_ln_packed_kernel(%arg0: i32, %arg1: memref<8x128xf32, #tpu.memory_space<vmem>>, %arg2: memref<1x128xf32, #tpu.memory_space<vmem>>, %arg3: memref<1x128xf32, #tpu.memory_space<vmem>>, %arg4: memref<128x128xf32, #tpu.memory_space<vmem>>, %arg5: memref<8x128xf32, #tpu.memory_space<vmem>>) attributes {dimension_semantics = [#tpu.dimension_semantics<parallel>], iteration_bounds = array<i64: 2>, scalar_prefetch = 0 : i64, scratch_operands = 0 : i64, tpu.core_type = #tpu.core_type<tc>, window_params = [{transform_indices = @transform_0, window_bounds = array<i64: 8, 128>}, {pipeline_mode = #tpu.pipeline_mode<synchronous>, transform_indices = @transform_1, window_bounds = array<i64: 1, 128>}, {pipeline_mode = #tpu.pipeline_mode<synchronous>, transform_indices = @transform_2, window_bounds = array<i64: 1, 128>}, {pipeline_mode = #tpu.pipeline_mode<synchronous>, transform_indices = @transform_3, window_bounds = array<i64: 128, 128>}, {transform_indices = @transform_4, window_bounds = array<i64: 8, 128>}]} {
    %c0 = arith.constant 0 : index
    %c0_0 = arith.constant 0 : index
    %0 = vector.load %arg1[%c0, %c0_0] : memref<8x128xf32, #tpu.memory_space<vmem>>, vector<8x128xf32>
    %c0_1 = arith.constant 0 : index
    %c0_2 = arith.constant 0 : index
    %1 = vector.load %arg4[%c0_1, %c0_2] : memref<128x128xf32, #tpu.memory_space<vmem>>, vector<128x128xf32>
    %cst = arith.constant dense<0.000000e+00> : vector<8x128xf32>
    %2 = tpu.matmul %0, %1, %cst {dimension_numbers = #tpu.dot_dimension_numbers<[1], [0], [0], [1], [0, 0, 1, 1], [], []>, precision = #tpu.contract_precision<fp32>} : vector<8x128xf32>, vector<128x128xf32>, vector<8x128xf32> -> vector<8x128xf32>
    %3 = arith.subf %0, %2 : vector<8x128xf32>
    %4 = arith.mulf %3, %3 : vector<8x128xf32>
    %cst_3 = arith.constant dense<0.000000e+00> : vector<8x128xf32>
    %5 = tpu.matmul %4, %1, %cst_3 {dimension_numbers = #tpu.dot_dimension_numbers<[1], [0], [0], [1], [0, 0, 1, 1], [], []>, precision = #tpu.contract_precision<fp32>} : vector<8x128xf32>, vector<128x128xf32>, vector<8x128xf32> -> vector<8x128xf32>
    %cst_4 = arith.constant 9.99999974E-6 : f32
    %6 = vector.broadcast %cst_4 : f32 to vector<8x128xf32>
    %7 = arith.addf %5, %6 : vector<8x128xf32>
    %8 = math.rsqrt %7 : vector<8x128xf32>
    %9 = arith.mulf %3, %8 : vector<8x128xf32>
    %c0_5 = arith.constant 0 : index
    %c0_6 = arith.constant 0 : index
    %10 = vector.load %arg2[%c0_5, %c0_6] : memref<1x128xf32, #tpu.memory_space<vmem>>, vector<1x128xf32>
    %11 = vector.broadcast %10 : vector<1x128xf32> to vector<8x128xf32>
    %12 = arith.mulf %9, %11 : vector<8x128xf32>
    %c0_7 = arith.constant 0 : index
    %c0_8 = arith.constant 0 : index
    %13 = vector.load %arg3[%c0_7, %c0_8] : memref<1x128xf32, #tpu.memory_space<vmem>>, vector<1x128xf32>
    %14 = vector.broadcast %13 : vector<1x128xf32> to vector<8x128xf32>
    %15 = arith.addf %12, %14 : vector<8x128xf32>
    %c0_9 = arith.constant 0 : index
    %c0_10 = arith.constant 0 : index
    %16 = vector.load %arg5[%c0_9, %c0_10] : memref<8x128xf32, #tpu.memory_space<vmem>>, vector<8x128xf32>
    tpu.vector_store %arg5[%c0_9, %c0_10], %15 {strides = array<i32>} : memref<8x128xf32, #tpu.memory_space<vmem>>, vector<8x128xf32>,
    return
  }
  func.func @transform_0(%arg0: i32) -> (i32, i32) {
    %c0_i32 = arith.constant 0 : i32
    %c0_i32_0 = arith.constant 0 : i32
    return %arg0, %c0_i32 : i32, i32
  }
  func.func @transform_1(%arg0: i32) -> (i32, i32) {
    %c0_i32 = arith.constant 0 : i32
    %c0_i32_0 = arith.constant 0 : i32
    %c0_i32_1 = arith.constant 0 : i32
    return %c0_i32, %c0_i32_0 : i32, i32
  }
  func.func @transform_2(%arg0: i32) -> (i32, i32) {
    %c0_i32 = arith.constant 0 : i32
    %c0_i32_0 = arith.constant 0 : i32
    %c0_i32_1 = arith.constant 0 : i32
    return %c0_i32, %c0_i32_0 : i32, i32
  }
  func.func @transform_3(%arg0: i32) -> (i32, i32) {
    %c0_i32 = arith.constant 0 : i32
    %c0_i32_0 = arith.constant 0 : i32
    %c0_i32_1 = arith.constant 0 : i32
    return %c0_i32, %c0_i32_0 : i32, i32
  }
  func.func @transform_4(%arg0: i32) -> (i32, i32) {
    %c0_i32 = arith.constant 0 : i32
    %c0_i32_0 = arith.constant 0 : i32
    return %arg0, %c0_i32 : i32, i32
  }
}

</mosaic_0001>

<llo_original>
// kernel: tpu_custom_call.1
$region0: #{tpu_custom_call.1}
  #allocation0 [shape = 'u32[]', space=smem, size = 0x4, offset = 0x4, fixed_abs, tag = 'smem constant byte address 0x4 - core index']
  #allocation1 [shape = 'u32[144,128]{1,0:T(1,128)}', space=vmem, size = 0x12000, scoped, tag = 'internal scratch']
  %s0 = inlined_call_operand.hbm [shape: f32[16,128], index: 0, kind: input, shape index: {}]
  %s1 = inlined_call_operand.vmem [shape: f32[1,128], index: 1, kind: input, shape index: {}]
  %s2 = inlined_call_operand.vmem [shape: f32[1,128], index: 2, kind: input, shape index: {}]
  %s3 = inlined_call_operand.hbm [shape: f32[128,128], index: 3, kind: input, shape index: {}]
  %s4 = inlined_call_operand.hbm [shape: f32[16,128], index: 4, kind: output, shape index: {}]
  %s5 = sld [smem:[#allocation0]]
  $region57: #{tpu_custom_call.1} parent=0
    _
  %s7 = ssub.s32 1, %s5
  %s8 = scalar_select 0, %s7, %s5
  $region1: #{tpu_custom_call.1} parent=0
    #allocation2 [shape = 'u8[8192]{0}', space=vmem, size = 0x2000, scoped, tag = 'input window, operand 0']
    #allocation3 [shape = 's32[2]{0}', space=sflag, size = 0x8, scoped, tag = 'scoped memory for tpu_custom_call.1']
    #allocation4 [shape = 's32[2]{0}', space=sflag, size = 0x8, scoped, tag = 'scoped memory for tpu_custom_call.1']
    #allocation5 [shape = 'u8[65536]{0}', space=vmem, size = 0x10000, scoped, tag = 'input window, operand 3, single buffered']
    #allocation6 [shape = 's32[1]{0}', space=sflag, size = 0x4, scoped, tag = 'scoped memory for tpu_custom_call.1']
    #allocation7 [shape = 'u8[8192]{0}', space=vmem, size = 0x2000, scoped, tag = 'output window, operand 0']
    %9 = vsyncpa [#allocation3], 0
    %s10 = scalar_lea.sflag [#allocation3], 1
    %11 = vsyncpa %s10, 0
    %12 = vsyncpa [#allocation6], 0
    %13 = vsyncpa [#allocation4], 0
    %s14 = scalar_lea.sflag [#allocation4], 1
    %15 = vsyncpa %s14, 0
    loop: start=0, step=1, limit=4
    $region2: #{tpu_custom_call.1} parent=1 // loop_pre_header
      _
    $region3: #{tpu_custom_call.1} parent=1 // loop_header
      %s17 = sphi 0, %s21
      %p18 = scmp.ge.s32.totalorder %s17, 4
      %s27 = sphi 0, %s29
      %s30 = sphi 0, %s27
      %s31 = sphi 0, %s30
      %s47 = sphi 0, %s31
      %s51 = sphi 0, %s51
      %s53 = sphi 0, %s51
      %s54 = sphi 0, %s53
      %s68 = sphi 0, %s54
      %s72 = sphi 0, %s72
      %s74 = sphi 0, %s72
      %s75 = sphi 0, %s74
      %s89 = sphi 0, %s75
      %s93 = sphi 0, %s93
      %s95 = sphi 0, %s93
      %s96 = sphi 0, %s95
      %s110 = sphi 0, %s96
      %s116 = sphi 0, %s118
      %s119 = sphi 0, %s116
      %s120 = sphi 0, %s119
      %s136 = sphi 0, %s120
    $region4: #{tpu_custom_call.1} parent=1 // loop_header_branch
      %20 = sbr.rel (%p18) target = $region8
    $region5: #{tpu_custom_call.1} parent=1 // loop_body
      %s22 = ssub.s32 %s17, 1
      %s23 = ssub.s32 %s17, 2
      %s24 = sadd.s32 %s17, 1
      %s25 = ssub.s32 %s17, %s24
      %p26 = scmp.eq.s32.totalorder %s25, 0
      %s28 = sadd.s32 %s27, 1
      %s29 = scalar_select %p26, %s27, %s28
      %p32 = pneg %p26
      %p33 = scmp.eq.s32.totalorder %s17, 1
      %p34 = por %p32, %p33
      %p35 = scmp.ne.s32.totalorder %s27, %s30
      %p36 = scmp.eq.s32.totalorder %s17, 0
      %p37 = por %p35, %p36
      %p38 = scmp.ne.s32.totalorder %s27, %s30
      %p39 = scmp.eq.s32.totalorder %s22, 1
      %p40 = por %p38, %p39
      %p41 = scmp.ne.s32.totalorder %s30, %s31
      %p42 = scmp.eq.s32.totalorder %s22, 0
      %p43 = por %p41, %p42
      %p44 = scmp.ne.s32.totalorder %s30, %s31
      %p45 = scmp.eq.s32.totalorder %s23, 1
      %p46 = por %p44, %p45
      %p48 = scmp.ne.s32.totalorder %s31, %s47
      %p49 = scmp.eq.s32.totalorder %s23, 0
      %p50 = por %p48, %p49
      %s52 = sadd.s32 %s51, 1
      %p55 = scmp.eq.s32.totalorder %s17, 1
      %p56 = scmp.ne.s32.totalorder %s51, %s53
      %p57 = scmp.eq.s32.totalorder %s17, 0
      %p58 = por %p56, %p57
      %p59 = scmp.ne.s32.totalorder %s51, %s53
      %p60 = scmp.eq.s32.totalorder %s22, 1
      %p61 = por %p59, %p60
      %p62 = scmp.ne.s32.totalorder %s53, %s54
      %p63 = scmp.eq.s32.totalorder %s22, 0
      %p64 = por %p62, %p63
      %p65 = scmp.ne.s32.totalorder %s53, %s54
      %p66 = scmp.eq.s32.totalorder %s23, 1
      %p67 = por %p65, %p66
      %p69 = scmp.ne.s32.totalorder %s54, %s68
      %p70 = scmp.eq.s32.totalorder %s23, 0
      %p71 = por %p69, %p70
      %s73 = sadd.s32 %s72, 1
      %p76 = scmp.eq.s32.totalorder %s17, 1
      %p77 = scmp.ne.s32.totalorder %s72, %s74
      %p78 = scmp.eq.s32.totalorder %s17, 0
      %p79 = por %p77, %p78
      %p80 = scmp.ne.s32.totalorder %s72, %s74
      %p81 = scmp.eq.s32.totalorder %s22, 1
      %p82 = por %p80, %p81
      %p83 = scmp.ne.s32.totalorder %s74, %s75
      %p84 = scmp.eq.s32.totalorder %s22, 0
      %p85 = por %p83, %p84
      %p86 = scmp.ne.s32.totalorder %s74, %s75
      %p87 = scmp.eq.s32.totalorder %s23, 1
      %p88 = por %p86, %p87
      %p90 = scmp.ne.s32.totalorder %s75, %s89
      %p91 = scmp.eq.s32.totalorder %s23, 0
      %p92 = por %p90, %p91
      %s94 = sadd.s32 %s93, 1
      %p97 = scmp.eq.s32.totalorder %s17, 1
      %p98 = scmp.ne.s32.totalorder %s93, %s95
      %p99 = scmp.eq.s32.totalorder %s17, 0
      %p100 = por %p98, %p99
      %p101 = scmp.ne.s32.totalorder %s93, %s95
      %p102 = scmp.eq.s32.totalorder %s22, 1
      %p103 = por %p101, %p102
      %p104 = scmp.ne.s32.totalorder %s95, %s96
      %p105 = scmp.eq.s32.totalorder %s22, 0
      %p106 = por %p104, %p105
      %p107 = scmp.ne.s32.totalorder %s95, %s96
      %p108 = scmp.eq.s32.totalorder %s23, 1
      %p109 = por %p107, %p108
      %p111 = scmp.ne.s32.totalorder %s96, %s110
      %p112 = scmp.eq.s32.totalorder %s23, 0
      %p113 = por %p111, %p112
      %s114 = ssub.s32 %s17, %s24
      %p115 = scmp.eq.s32.totalorder %s114, 0
      %s117 = sadd.s32 %s116, 1
      %s118 = scalar_select %p115, %s116, %s117
      %p121 = pneg %p115
      %p122 = scmp.eq.s32.totalorder %s17, 1
      %p123 = por %p121, %p122
      %p124 = scmp.ne.s32.totalorder %s116, %s119
      %p125 = scmp.eq.s32.totalorder %s17, 0
      %p126 = por %p124, %p125
      %p127 = scmp.ne.s32.totalorder %s116, %s119
      %p128 = scmp.eq.s32.totalorder %s22, 1
      %p129 = por %p127, %p128
      %p130 = scmp.ne.s32.totalorder %s119, %s120
      %p131 = scmp.eq.s32.totalorder %s22, 0
      %p132 = por %p130, %p131
      %p133 = scmp.ne.s32.totalorder %s119, %s120
      %p134 = scmp.eq.s32.totalorder %s23, 1
      %p135 = por %p133, %p134
      %p137 = scmp.ne.s32.totalorder %s120, %s136
      %p138 = scmp.eq.s32.totalorder %s23, 0
      %p139 = por %p137, %p138
      %p140 = scmp.le.s32.totalorder 1, %s17
      %p141 = scmp.lt.s32.totalorder %s17, 3
      %p142 = pnand %p140, %p141
      %p143 = pneg %p142
      // Predicated region
      $region9: #{tpu_custom_call.1} parent=5 // pred_check
        _
      $region10: #{tpu_custom_call.1} parent=5 // pred_check_branch
        %145 = sbr.rel (%p142) target = $region12
      $region11: #{tpu_custom_call.1} parent=5 // pred_region
        %s146 = ssub.s32 %s17, 1
        // Predicated region
        $region13: #{tpu_custom_call.1} parent=11 // pred_check
          %p147 = pneg %p64
        $region14: #{tpu_custom_call.1} parent=11 // pred_check_branch
          %149 = sbr.rel (%p147) target = $region16
        $region15: #{tpu_custom_call.1} parent=11 // pred_region
          _
        $region16: #{tpu_custom_call.1} parent=11 // pred_fallthru
          _
        // Predicated region
        $region17: #{tpu_custom_call.1} parent=11 // pred_check
          %p150 = pneg %p85
        $region18: #{tpu_custom_call.1} parent=11 // pred_check_branch
          %152 = sbr.rel (%p150) target = $region20
        $region19: #{tpu_custom_call.1} parent=11 // pred_region
          _
        $region20: #{tpu_custom_call.1} parent=11 // pred_fallthru
          _
        // Predicated region
        $region21: #{tpu_custom_call.1} parent=11 // pred_check
          %p153 = pneg %p106
        $region22: #{tpu_custom_call.1} parent=11 // pred_check_branch
          %155 = sbr.rel (%p153) target = $region24
        $region23: #{tpu_custom_call.1} parent=11 // pred_region
          %s157 = ssub.s32 2048, 2048
          %158 = vsyncadd [#allocation6], %s157
          %s159 = sshll.u32 [#allocation5], 4
          %s160 = int_to_ptr.vmem [resolvable:$true] %s159
          %165 = dma.hbm_to_vmem [thread:$0]  %s3, 2048, %s160, [#allocation6], 128, 128, 8
        $region24: #{tpu_custom_call.1} parent=11 // pred_fallthru
          _
      $region12: #{tpu_custom_call.1} parent=5 // pred_fallthru
        _
      %p166 = scmp.lt.s32.totalorder %s17, 2
      // Predicated region
      $region25: #{tpu_custom_call.1} parent=5 // pred_check
        %p167 = pneg %p166
      $region26: #{tpu_custom_call.1} parent=5 // pred_check_branch
        %169 = sbr.rel (%p167) target = $region28
      $region27: #{tpu_custom_call.1} parent=5 // pred_region
        // Predicated region
        $region29: #{tpu_custom_call.1} parent=27 // pred_check
          %p170 = pneg %p37
        $region30: #{tpu_custom_call.1} parent=27 // pred_check_branch
          %172 = sbr.rel (%p170) target = $region32
        $region31: #{tpu_custom_call.1} parent=27 // pred_region
          %s173 = sand.u32 %s27, 1
          %s174 = scalar_lea.sflag [#allocation3], %s173
          %s175 = sand.u32 %s27, 1
          %s176 = smul.addr %s175, 8
          %s177 = scalar_lea.vmem [#allocation2], %s176
          %s179 = ssub.s32 128, 128
          %180 = vsyncadd %s174, %s179
          %s181 = smul.addr %s17, 128
          %s182 = scalar_lea.hbm %s0, %s181
          %s184 = sshll.u32 %s177, 4
          %s185 = int_to_ptr.vmem [resolvable:$true] %s184
          %187 = dma.hbm_to_vmem [thread:$0]  %s182, 128, %s185, %s174
        $region32: #{tpu_custom_call.1} parent=27 // pred_fallthru
          _
      $region28: #{tpu_custom_call.1} parent=5 // pred_fallthru
        _
      %p188 = scmp.le.s32.totalorder 1, %s17
      %p189 = scmp.lt.s32.totalorder %s17, 3
      %p190 = pnand %p188, %p189
      %p191 = pneg %p190
      // Predicated region
      $region33: #{tpu_custom_call.1} parent=5 // pred_check
        _
      $region34: #{tpu_custom_call.1} parent=5 // pred_check_branch
        %193 = sbr.rel (%p190) target = $region36
      $region35: #{tpu_custom_call.1} parent=5 // pred_region
        %s194 = ssub.s32 %s17, 1
        %s195 = sand.u32 %s30, 1
        %s196 = scalar_lea.sflag [#allocation3], %s195
        %s197 = sand.u32 %s30, 1
        %s198 = smul.addr %s197, 8
        %s199 = scalar_lea.vmem [#allocation2], %s198
        // Predicated region
        $region37: #{tpu_custom_call.1} parent=35 // pred_check
          %p200 = pneg %p43
        $region38: #{tpu_custom_call.1} parent=35 // pred_check_branch
          %202 = sbr.rel (%p200) target = $region40
        $region39: #{tpu_custom_call.1} parent=35 // pred_region
          %203 = dma.done %s196, 128
        $region40: #{tpu_custom_call.1} parent=35 // pred_fallthru
          _
        // Predicated region
        $region41: #{tpu_custom_call.1} parent=35 // pred_check
          %p204 = pneg %p106
        $region42: #{tpu_custom_call.1} parent=35 // pred_check_branch
          %206 = sbr.rel (%p204) target = $region44
        $region43: #{tpu_custom_call.1} parent=35 // pred_region
          %207 = dma.done [#allocation6], 2048
        $region44: #{tpu_custom_call.1} parent=35 // pred_fallthru
          _
        %s208 = sand.u32 %s30, 1
        %s209 = scalar_lea.sflag [#allocation3], %s208
        %s210 = sand.u32 %s30, 1
        %s211 = smul.addr %s210, 8
        %s212 = scalar_lea.vmem [#allocation2], %s211
        %p213 = pneg %p43
        %p214 = pneg %p40
        %p215 = pneg %p64
        %p216 = pneg %p61
        %p217 = pneg %p85
        %p218 = pneg %p82
        %p219 = pneg %p106
        %p220 = pneg %p103
        %p221 = pneg %p132
        %p222 = pneg %p129
        %s223 = sand.u32 %s119, 1
        %s224 = scalar_lea.sflag [#allocation4], %s223
        %s225 = sand.u32 %s119, 1
        %s226 = smul.addr %s225, 8
        %s227 = scalar_lea.vmem [#allocation7], %s226
        %v228 = vld [vmem:[%s199] sm:$0xff]
        %v229 = vld [vmem:[#allocation5] sm:$0xff]
        %v230 = vld [vmem:[#allocation5 + $0x8] sm:$0xff]
        %v231 = vld [vmem:[#allocation5 + $0x10] sm:$0xff]
        %v232 = vld [vmem:[#allocation5 + $0x18] sm:$0xff]
        %v233 = vld [vmem:[#allocation5 + $0x20] sm:$0xff]
        %v234 = vld [vmem:[#allocation5 + $0x28] sm:$0xff]
        %v235 = vld [vmem:[#allocation5 + $0x30] sm:$0xff]
        %v236 = vld [vmem:[#allocation5 + $0x38] sm:$0xff]
        %v237 = vld [vmem:[#allocation5 + $0x40] sm:$0xff]
        %v238 = vld [vmem:[#allocation5 + $0x48] sm:$0xff]
        %v239 = vld [vmem:[#allocation5 + $0x50] sm:$0xff]
        %v240 = vld [vmem:[#allocation5 + $0x58] sm:$0xff]
        %v241 = vld [vmem:[#allocation5 + $0x60] sm:$0xff]
        %v242 = vld [vmem:[#allocation5 + $0x68] sm:$0xff]
        %v243 = vld [vmem:[#allocation5 + $0x70] sm:$0xff]
        %v244 = vld [vmem:[#allocation5 + $0x78] sm:$0xff]
        %245 = vmatprep.subr.mxu0 0.0
        %v246 = vand.u32 %v229, 4294901760
        %247 = vmatpush1.msra.mxu0 %v246
        %248 = vmatprep.subr.mxu0 0.0
        %v249 = vand.u32 %v230, 4294901760
        %250 = vmatpush1.msra.mxu0 %v249
        %251 = vmatprep.subr.mxu0 0.0
        %v252 = vand.u32 %v231, 4294901760
        %253 = vmatpush1.msra.mxu0 %v252
        %254 = vmatprep.subr.mxu0 0.0
        %v255 = vand.u32 %v232, 4294901760
        %256 = vmatpush1.msra.mxu0 %v255
        %257 = vmatprep.subr.mxu0 0.0
        %v258 = vand.u32 %v233, 4294901760
        %259 = vmatpush1.msra.mxu0 %v258
        %260 = vmatprep.subr.mxu0 0.0
        %v261 = vand.u32 %v234, 4294901760
        %262 = vmatpush1.msra.mxu0 %v261
        %263 = vmatprep.subr.mxu0 0.0
        %v264 = vand.u32 %v235, 4294901760
        %265 = vmatpush1.msra.mxu0 %v264
        %266 = vmatprep.subr.mxu0 0.0
        %v267 = vand.u32 %v236, 4294901760
        %268 = vmatpush1.msra.mxu0 %v267
        %269 = vmatprep.subr.mxu0 0.0
        %v270 = vand.u32 %v237, 4294901760
        %271 = vmatpush1.msra.mxu0 %v270
        %272 = vmatprep.subr.mxu0 0.0
        %v273 = vand.u32 %v238, 4294901760
        %274 = vmatpush1.msra.mxu0 %v273
        %275 = vmatprep.subr.mxu0 0.0
        %v276 = vand.u32 %v239, 4294901760
        %277 = vmatpush1.msra.mxu0 %v276
        %278 = vmatprep.subr.mxu0 0.0
        %v279 = vand.u32 %v240, 4294901760
        %280 = vmatpush1.msra.mxu0 %v279
        %281 = vmatprep.subr.mxu0 0.0
        %v282 = vand.u32 %v241, 4294901760
        %283 = vmatpush1.msra.mxu0 %v282
        %284 = vmatprep.subr.mxu0 0.0
        %v285 = vand.u32 %v242, 4294901760
        %286 = vmatpush1.msra.mxu0 %v285
        %287 = vmatprep.subr.mxu0 0.0
        %v288 = vand.u32 %v243, 4294901760
        %289 = vmatpush1.msra.mxu0 %v288
        %290 = vmatprep.subr.mxu0 0.0
        %v291 = vand.u32 %v244, 4294901760
        %292 = vmatpush1.msra.mxu0 %v291
        %293 = vmatprep.subr.mxu0 0.0
        %294 = vmatpush1.msra.mxu0 0.0
        %295 = vmatprep.subr.mxu0 0.0
        %296 = vmatpush1.msra.mxu0 0.0
        %297 = vmatprep.subr.mxu0 0.0
        %298 = vmatpush1.msra.mxu0 0.0
        %299 = vmatprep.subr.mxu0 0.0
        %300 = vmatpush1.msra.mxu0 0.0
        %301 = vmatprep.subr.mxu0 0.0
        %302 = vmatpush1.msra.mxu0 0.0
        %303 = vmatprep.subr.mxu0 0.0
        %304 = vmatpush1.msra.mxu0 0.0
        %305 = vmatprep.subr.mxu0 0.0
        %306 = vmatpush1.msra.mxu0 0.0
        %307 = vmatprep.subr.mxu0 0.0
        %308 = vmatpush1.msra.mxu0 0.0
        %309 = vmatprep.subr.mxu0 0.0
        %310 = vmatpush1.msra.mxu0 0.0
        %311 = vmatprep.subr.mxu0 0.0
        %312 = vmatpush1.msra.mxu0 0.0
        %313 = vmatprep.subr.mxu0 0.0
        %314 = vmatpush1.msra.mxu0 0.0
        %315 = vmatprep.subr.mxu0 0.0
        %316 = vmatpush1.msra.mxu0 0.0
        %317 = vmatprep.subr.mxu0 0.0
        %318 = vmatpush1.msra.mxu0 0.0
        %319 = vmatprep.subr.mxu0 0.0
        %320 = vmatpush1.msra.mxu0 0.0
        %321 = vmatprep.subr.mxu0 0.0
        %322 = vmatpush1.msra.mxu0 0.0
        %323 = vmatprep.subr.mxu0 0.0
        %324 = vmatpush1.msra.mxu0 0.0
        %325 = vmatprep.mubr.f32.mxu0 0.0
        %v326 = vand.u32 %v228, 4294901760
        %v327 = vsub.f32 %v228, %v326
        %v328 = vand.u32 %v327, 4294901760
        %v329 = vsub.f32 %v327, %v328
        %v330 = vand.u32 %v329, 4294901760
        %331 = vmatmul.mubr.f32.gmra.mrb[0].mxu0 %v330
        %v332 = vpop.f32.mrb[0].mxu0
        %v333 = vadd.f32 0.0, %v332
        %v334 = vpop.f32.mrb[0].mxu0
        %335 = vdwg.mxu0
        %336 = vmatprep.subr.mxu0 0.0
        %v337 = vand.u32 %v229, 4294901760
        %v338 = vsub.f32 %v229, %v337
        %v339 = vand.u32 %v338, 4294901760
        %v340 = vsub.f32 %v338, %v339
        %v341 = vand.u32 %v340, 4294901760
        %342 = vmatpush1.msra.mxu0 %v341
        %343 = vmatprep.subr.mxu0 0.0
        %v344 = vand.u32 %v230, 4294901760
        %v345 = vsub.f32 %v230, %v344
        %v346 = vand.u32 %v345, 4294901760
        %v347 = vsub.f32 %v345, %v346
        %v348 = vand.u32 %v347, 4294901760
        %349 = vmatpush1.msra.mxu0 %v348
        %350 = vmatprep.subr.mxu0 0.0
        %v351 = vand.u32 %v231, 4294901760
        %v352 = vsub.f32 %v231, %v351
        %v353 = vand.u32 %v352, 4294901760
        %v354 = vsub.f32 %v352, %v353
        %v355 = vand.u32 %v354, 4294901760
        %356 = vmatpush1.msra.mxu0 %v355
        %357 = vmatprep.subr.mxu0 0.0
        %v358 = vand.u32 %v232, 4294901760
        %v359 = vsub.f32 %v232, %v358
        %v360 = vand.u32 %v359, 4294901760
        %v361 = vsub.f32 %v359, %v360
        %v362 = vand.u32 %v361, 4294901760
        %363 = vmatpush1.msra.mxu0 %v362
        %364 = vmatprep.subr.mxu0 0.0
        %v365 = vand.u32 %v233, 4294901760
        %v366 = vsub.f32 %v233, %v365
        %v367 = vand.u32 %v366, 4294901760
        %v368 = vsub.f32 %v366, %v367
        %v369 = vand.u32 %v368, 4294901760
        %370 = vmatpush1.msra.mxu0 %v369
        %371 = vmatprep.subr.mxu0 0.0
        %v372 = vand.u32 %v234, 4294901760
        %v373 = vsub.f32 %v234, %v372
        %v374 = vand.u32 %v373, 4294901760
        %v375 = vsub.f32 %v373, %v374
        %v376 = vand.u32 %v375, 4294901760
        %377 = vmatpush1.msra.mxu0 %v376
        %378 = vmatprep.subr.mxu0 0.0
        %v379 = vand.u32 %v235, 4294901760
        %v380 = vsub.f32 %v235, %v379
        %v381 = vand.u32 %v380, 4294901760
        %v382 = vsub.f32 %v380, %v381
        %v383 = vand.u32 %v382, 4294901760
        %384 = vmatpush1.msra.mxu0 %v383
        %385 = vmatprep.subr.mxu0 0.0
        %v386 = vand.u32 %v236, 4294901760
        %v387 = vsub.f32 %v236, %v386
        %v388 = vand.u32 %v387, 4294901760
        %v389 = vsub.f32 %v387, %v388
        %v390 = vand.u32 %v389, 4294901760
        %391 = vmatpush1.msra.mxu0 %v390
        %392 = vmatprep.subr.mxu0 0.0
        %v393 = vand.u32 %v237, 4294901760
        %v394 = vsub.f32 %v237, %v393
        %v395 = vand.u32 %v394, 4294901760
        %v396 = vsub.f32 %v394, %v395
        %v397 = vand.u32 %v396, 4294901760
        %398 = vmatpush1.msra.mxu0 %v397
        %399 = vmatprep.subr.mxu0 0.0
        %v400 = vand.u32 %v238, 4294901760
        %v401 = vsub.f32 %v238, %v400
        %v402 = vand.u32 %v401, 4294901760
        %v403 = vsub.f32 %v401, %v402
        %v404 = vand.u32 %v403, 4294901760
        %405 = vmatpush1.msra.mxu0 %v404
        %406 = vmatprep.subr.mxu0 0.0
        %v407 = vand.u32 %v239, 4294901760
        %v408 = vsub.f32 %v239, %v407
        %v409 = vand.u32 %v408, 4294901760
        %v410 = vsub.f32 %v408, %v409
        %v411 = vand.u32 %v410, 4294901760
        %412 = vmatpush1.msra.mxu0 %v411
        %413 = vmatprep.subr.mxu0 0.0
        %v414 = vand.u32 %v240, 4294901760
        %v415 = vsub.f32 %v240, %v414
        %v416 = vand.u32 %v415, 4294901760
        %v417 = vsub.f32 %v415, %v416
        %v418 = vand.u32 %v417, 4294901760
        %419 = vmatpush1.msra.mxu0 %v418
        %420 = vmatprep.subr.mxu0 0.0
        %v421 = vand.u32 %v241, 4294901760
        %v422 = vsub.f32 %v241, %v421
        %v423 = vand.u32 %v422, 4294901760
        %v424 = vsub.f32 %v422, %v423
        %v425 = vand.u32 %v424, 4294901760
        %426 = vmatpush1.msra.mxu0 %v425
        %427 = vmatprep.subr.mxu0 0.0
        %v428 = vand.u32 %v242, 4294901760
        %v429 = vsub.f32 %v242, %v428
        %v430 = vand.u32 %v429, 4294901760
        %v431 = vsub.f32 %v429, %v430
        %v432 = vand.u32 %v431, 4294901760
        %433 = vmatpush1.msra.mxu0 %v432
        %434 = vmatprep.subr.mxu0 0.0
        %v435 = vand.u32 %v243, 4294901760
        %v436 = vsub.f32 %v243, %v435
        %v437 = vand.u32 %v436, 4294901760
        %v438 = vsub.f32 %v436, %v437
        %v439 = vand.u32 %v438, 4294901760
        %440 = vmatpush1.msra.mxu0 %v439
        %441 = vmatprep.subr.mxu0 0.0
        %v442 = vand.u32 %v244, 4294901760
        %v443 = vsub.f32 %v244, %v442
        %v444 = vand.u32 %v443, 4294901760
        %v445 = vsub.f32 %v443, %v444
        %v446 = vand.u32 %v445, 4294901760
        %447 = vmatpush1.msra.mxu0 %v446
        %448 = vmatprep.subr.mxu0 0.0
        %449 = vmatpush1.msra.mxu0 0.0
        %450 = vmatprep.subr.mxu0 0.0
        %451 = vmatpush1.msra.mxu0 0.0
        %452 = vmatprep.subr.mxu0 0.0
        %453 = vmatpush1.msra.mxu0 0.0
        %454 = vmatprep.subr.mxu0 0.0
        %455 = vmatpush1.msra.mxu0 0.0
        %456 = vmatprep.subr.mxu0 0.0
        %457 = vmatpush1.msra.mxu0 0.0
        %458 = vmatprep.subr.mxu0 0.0
        %459 = vmatpush1.msra.mxu0 0.0
        %460 = vmatprep.subr.mxu0 0.0
        %461 = vmatpush1.msra.mxu0 0.0
        %462 = vmatprep.subr.mxu0 0.0
        %463 = vmatpush1.msra.mxu0 0.0
        %464 = vmatprep.subr.mxu0 0.0
        %465 = vmatpush1.msra.mxu0 0.0
        %466 = vmatprep.subr.mxu0 0.0
        %467 = vmatpush1.msra.mxu0 0.0
        %468 = vmatprep.subr.mxu0 0.0
        %469 = vmatpush1.msra.mxu0 0.0
        %470 = vmatprep.subr.mxu0 0.0
        %471 = vmatpush1.msra.mxu0 0.0
        %472 = vmatprep.subr.mxu0 0.0
        %473 = vmatpush1.msra.mxu0 0.0
        %474 = vmatprep.subr.mxu0 0.0
        %475 = vmatpush1.msra.mxu0 0.0
        %476 = vmatprep.subr.mxu0 0.0
        %477 = vmatpush1.msra.mxu0 0.0
        %478 = vmatprep.subr.mxu0 0.0
        %479 = vmatpush1.msra.mxu0 0.0
        %480 = vmatprep.mubr.f32.mxu0 0.0
        %v481 = vand.u32 %v228, 4294901760
        %482 = vmatmul.mubr.f32.gmra.mrb[0].mxu0 %v481
        %v483 = vpop.f32.mrb[0].mxu0
        %v484 = vadd.f32 %v333, %v483
        %v485 = vpop.f32.mrb[0].mxu0
        %486 = vdwg.mxu0
        %487 = vmatprep.subr.mxu0 0.0
        %v488 = vand.u32 %v229, 4294901760
        %v489 = vsub.f32 %v229, %v488
        %490 = vmatpush1.msra.mxu0 %v489
        %491 = vmatprep.subr.mxu0 0.0
        %v492 = vand.u32 %v230, 4294901760
        %v493 = vsub.f32 %v230, %v492
        %494 = vmatpush1.msra.mxu0 %v493
        %495 = vmatprep.subr.mxu0 0.0
        %v496 = vand.u32 %v231, 4294901760
        %v497 = vsub.f32 %v231, %v496
        %498 = vmatpush1.msra.mxu0 %v497
        %499 = vmatprep.subr.mxu0 0.0
        %v500 = vand.u32 %v232, 4294901760
        %v501 = vsub.f32 %v232, %v500
        %502 = vmatpush1.msra.mxu0 %v501
        %503 = vmatprep.subr.mxu0 0.0
        %v504 = vand.u32 %v233, 4294901760
        %v505 = vsub.f32 %v233, %v504
        %506 = vmatpush1.msra.mxu0 %v505
        %507 = vmatprep.subr.mxu0 0.0
        %v508 = vand.u32 %v234, 4294901760
        %v509 = vsub.f32 %v234, %v508
        %510 = vmatpush1.msra.mxu0 %v509
        %511 = vmatprep.subr.mxu0 0.0
        %v512 = vand.u32 %v235, 4294901760
        %v513 = vsub.f32 %v235, %v512
        %514 = vmatpush1.msra.mxu0 %v513
        %515 = vmatprep.subr.mxu0 0.0
        %v516 = vand.u32 %v236, 4294901760
        %v517 = vsub.f32 %v236, %v516
        %518 = vmatpush1.msra.mxu0 %v517
        %519 = vmatprep.subr.mxu0 0.0
        %v520 = vand.u32 %v237, 4294901760
        %v521 = vsub.f32 %v237, %v520
        %522 = vmatpush1.msra.mxu0 %v521
        %523 = vmatprep.subr.mxu0 0.0
        %v524 = vand.u32 %v238, 4294901760
        %v525 = vsub.f32 %v238, %v524
        %526 = vmatpush1.msra.mxu0 %v525
        %527 = vmatprep.subr.mxu0 0.0
        %v528 = vand.u32 %v239, 4294901760
        %v529 = vsub.f32 %v239, %v528
        %530 = vmatpush1.msra.mxu0 %v529
        %531 = vmatprep.subr.mxu0 0.0
        %v532 = vand.u32 %v240, 4294901760
        %v533 = vsub.f32 %v240, %v532
        %534 = vmatpush1.msra.mxu0 %v533
        %535 = vmatprep.subr.mxu0 0.0
        %v536 = vand.u32 %v241, 4294901760
        %v537 = vsub.f32 %v241, %v536
        %538 = vmatpush1.msra.mxu0 %v537
        %539 = vmatprep.subr.mxu0 0.0
        %v540 = vand.u32 %v242, 4294901760
        %v541 = vsub.f32 %v242, %v540
        %542 = vmatpush1.msra.mxu0 %v541
        %543 = vmatprep.subr.mxu0 0.0
        %v544 = vand.u32 %v243, 4294901760
        %v545 = vsub.f32 %v243, %v544
        %546 = vmatpush1.msra.mxu0 %v545
        %547 = vmatprep.subr.mxu0 0.0
        %v548 = vand.u32 %v244, 4294901760
        %v549 = vsub.f32 %v244, %v548
        %550 = vmatpush1.msra.mxu0 %v549
        %551 = vmatprep.subr.mxu0 0.0
        %552 = vmatpush1.msra.mxu0 0.0
        %553 = vmatprep.subr.mxu0 0.0
        %554 = vmatpush1.msra.mxu0 0.0
        %555 = vmatprep.subr.mxu0 0.0
        %556 = vmatpush1.msra.mxu0 0.0
        %557 = vmatprep.subr.mxu0 0.0
        %558 = vmatpush1.msra.mxu0 0.0
        %559 = vmatprep.subr.mxu0 0.0
        %560 = vmatpush1.msra.mxu0 0.0
        %561 = vmatprep.subr.mxu0 0.0
        %562 = vmatpush1.msra.mxu0 0.0
        %563 = vmatprep.subr.mxu0 0.0
        %564 = vmatpush1.msra.mxu0 0.0
        %565 = vmatprep.subr.mxu0 0.0
        %566 = vmatpush1.msra.mxu0 0.0
        %567 = vmatprep.subr.mxu0 0.0
        %568 = vmatpush1.msra.mxu0 0.0
        %569 = vmatprep.subr.mxu0 0.0
        %570 = vmatpush1.msra.mxu0 0.0
        %571 = vmatprep.subr.mxu0 0.0
        %572 = vmatpush1.msra.mxu0 0.0
        %573 = vmatprep.subr.mxu0 0.0
        %574 = vmatpush1.msra.mxu0 0.0
        %575 = vmatprep.subr.mxu0 0.0
        %576 = vmatpush1.msra.mxu0 0.0
        %577 = vmatprep.subr.mxu0 0.0
        %578 = vmatpush1.msra.mxu0 0.0
        %579 = vmatprep.subr.mxu0 0.0
        %580 = vmatpush1.msra.mxu0 0.0
        %581 = vmatprep.subr.mxu0 0.0
        %582 = vmatpush1.msra.mxu0 0.0
        %583 = vmatprep.mubr.f32.mxu0 0.0
        %v584 = vand.u32 %v228, 4294901760
        %v585 = vsub.f32 %v228, %v584
        %586 = vmatmul.mubr.f32.gmra.mrb[0].mxu0 %v585
        %v587 = vpop.f32.mrb[0].mxu0
        %v588 = vadd.f32 %v484, %v587
        %v589 = vpop.f32.mrb[0].mxu0
        %590 = vdwg.mxu0
        %591 = vmatprep.subr.mxu0 0.0
        %v592 = vand.u32 %v229, 4294901760
        %593 = vmatpush1.msra.mxu0 %v592
        %594 = vmatprep.subr.mxu0 0.0
        %v595 = vand.u32 %v230, 4294901760
        %596 = vmatpush1.msra.mxu0 %v595
        %597 = vmatprep.subr.mxu0 0.0
        %v598 = vand.u32 %v231, 4294901760
        %599 = vmatpush1.msra.mxu0 %v598
        %600 = vmatprep.subr.mxu0 0.0
        %v601 = vand.u32 %v232, 4294901760
        %602 = vmatpush1.msra.mxu0 %v601
        %603 = vmatprep.subr.mxu0 0.0
        %v604 = vand.u32 %v233, 4294901760
        %605 = vmatpush1.msra.mxu0 %v604
        %606 = vmatprep.subr.mxu0 0.0
        %v607 = vand.u32 %v234, 4294901760
        %608 = vmatpush1.msra.mxu0 %v607
        %609 = vmatprep.subr.mxu0 0.0
        %v610 = vand.u32 %v235, 4294901760
        %611 = vmatpush1.msra.mxu0 %v610
        %612 = vmatprep.subr.mxu0 0.0
        %v613 = vand.u32 %v236, 4294901760
        %614 = vmatpush1.msra.mxu0 %v613
        %615 = vmatprep.subr.mxu0 0.0
        %v616 = vand.u32 %v237, 4294901760
        %617 = vmatpush1.msra.mxu0 %v616
        %618 = vmatprep.subr.mxu0 0.0
        %v619 = vand.u32 %v238, 4294901760
        %620 = vmatpush1.msra.mxu0 %v619
        %621 = vmatprep.subr.mxu0 0.0
        %v622 = vand.u32 %v239, 4294901760
        %623 = vmatpush1.msra.mxu0 %v622
        %624 = vmatprep.subr.mxu0 0.0
        %v625 = vand.u32 %v240, 4294901760
        %626 = vmatpush1.msra.mxu0 %v625
        %627 = vmatprep.subr.mxu0 0.0
        %v628 = vand.u32 %v241, 4294901760
        %629 = vmatpush1.msra.mxu0 %v628
        %630 = vmatprep.subr.mxu0 0.0
        %v631 = vand.u32 %v242, 4294901760
        %632 = vmatpush1.msra.mxu0 %v631
        %633 = vmatprep.subr.mxu0 0.0
        %v634 = vand.u32 %v243, 4294901760
        %635 = vmatpush1.msra.mxu0 %v634
        %636 = vmatprep.subr.mxu0 0.0
        %v637 = vand.u32 %v244, 4294901760
        %638 = vmatpush1.msra.mxu0 %v637
        %639 = vmatprep.subr.mxu0 0.0
        %640 = vmatpush1.msra.mxu0 0.0
        %641 = vmatprep.subr.mxu0 0.0
        %642 = vmatpush1.msra.mxu0 0.0
        %643 = vmatprep.subr.mxu0 0.0
        %644 = vmatpush1.msra.mxu0 0.0
        %645 = vmatprep.subr.mxu0 0.0
        %646 = vmatpush1.msra.mxu0 0.0
        %647 = vmatprep.subr.mxu0 0.0
        %648 = vmatpush1.msra.mxu0 0.0
        %649 = vmatprep.subr.mxu0 0.0
        %650 = vmatpush1.msra.mxu0 0.0
        %651 = vmatprep.subr.mxu0 0.0
        %652 = vmatpush1.msra.mxu0 0.0
        %653 = vmatprep.subr.mxu0 0.0
        %654 = vmatpush1.msra.mxu0 0.0
        %655 = vmatprep.subr.mxu0 0.0
        %656 = vmatpush1.msra.mxu0 0.0
        %657 = vmatprep.subr.mxu0 0.0
        %658 = vmatpush1.msra.mxu0 0.0
        %659 = vmatprep.subr.mxu0 0.0
        %660 = vmatpush1.msra.mxu0 0.0
        %661 = vmatprep.subr.mxu0 0.0
        %662 = vmatpush1.msra.mxu0 0.0
        %663 = vmatprep.subr.mxu0 0.0
        %664 = vmatpush1.msra.mxu0 0.0
        %665 = vmatprep.subr.mxu0 0.0
        %666 = vmatpush1.msra.mxu0 0.0
        %667 = vmatprep.subr.mxu0 0.0
        %668 = vmatpush1.msra.mxu0 0.0
        %669 = vmatprep.subr.mxu0 0.0
        %670 = vmatpush1.msra.mxu0 0.0
        %671 = vmatprep.mubr.f32.mxu0 0.0
        %v672 = vand.u32 %v228, 4294901760
        %v673 = vsub.f32 %v228, %v672
        %v674 = vand.u32 %v673, 4294901760
        %675 = vmatmul.mubr.f32.gmra.mrb[0].mxu0 %v674
        %v676 = vpop.f32.mrb[0].mxu0
        %v677 = vadd.f32 %v588, %v676
        %v678 = vpop.f32.mrb[0].mxu0
        %679 = vdwg.mxu0
        %680 = vmatprep.subr.mxu0 0.0
        %v681 = vand.u32 %v229, 4294901760
        %v682 = vsub.f32 %v229, %v681
        %v683 = vand.u32 %v682, 4294901760
        %684 = vmatpush1.msra.mxu0 %v683
        %685 = vmatprep.subr.mxu0 0.0
        %v686 = vand.u32 %v230, 4294901760
        %v687 = vsub.f32 %v230, %v686
        %v688 = vand.u32 %v687, 4294901760
        %689 = vmatpush1.msra.mxu0 %v688
        %690 = vmatprep.subr.mxu0 0.0
        %v691 = vand.u32 %v231, 4294901760
        %v692 = vsub.f32 %v231, %v691
        %v693 = vand.u32 %v692, 4294901760
        %694 = vmatpush1.msra.mxu0 %v693
        %695 = vmatprep.subr.mxu0 0.0
        %v696 = vand.u32 %v232, 4294901760
        %v697 = vsub.f32 %v232, %v696
        %v698 = vand.u32 %v697, 4294901760
        %699 = vmatpush1.msra.mxu0 %v698
        %700 = vmatprep.subr.mxu0 0.0
        %v701 = vand.u32 %v233, 4294901760
        %v702 = vsub.f32 %v233, %v701
        %v703 = vand.u32 %v702, 4294901760
        %704 = vmatpush1.msra.mxu0 %v703
        %705 = vmatprep.subr.mxu0 0.0
        %v706 = vand.u32 %v234, 4294901760
        %v707 = vsub.f32 %v234, %v706
        %v708 = vand.u32 %v707, 4294901760
        %709 = vmatpush1.msra.mxu0 %v708
        %710 = vmatprep.subr.mxu0 0.0
        %v711 = vand.u32 %v235, 4294901760
        %v712 = vsub.f32 %v235, %v711
        %v713 = vand.u32 %v712, 4294901760
        %714 = vmatpush1.msra.mxu0 %v713
        %715 = vmatprep.subr.mxu0 0.0
        %v716 = vand.u32 %v236, 4294901760
        %v717 = vsub.f32 %v236, %v716
        %v718 = vand.u32 %v717, 4294901760
        %719 = vmatpush1.msra.mxu0 %v718
        %720 = vmatprep.subr.mxu0 0.0
        %v721 = vand.u32 %v237, 4294901760
        %v722 = vsub.f32 %v237, %v721
        %v723 = vand.u32 %v722, 4294901760
        %724 = vmatpush1.msra.mxu0 %v723
        %725 = vmatprep.subr.mxu0 0.0
        %v726 = vand.u32 %v238, 4294901760
        %v727 = vsub.f32 %v238, %v726
        %v728 = vand.u32 %v727, 4294901760
        %729 = vmatpush1.msra.mxu0 %v728
        %730 = vmatprep.subr.mxu0 0.0
        %v731 = vand.u32 %v239, 4294901760
        %v732 = vsub.f32 %v239, %v731
        %v733 = vand.u32 %v732, 4294901760
        %734 = vmatpush1.msra.mxu0 %v733
        %735 = vmatprep.subr.mxu0 0.0
        %v736 = vand.u32 %v240, 4294901760
        %v737 = vsub.f32 %v240, %v736
        %v738 = vand.u32 %v737, 4294901760
        %739 = vmatpush1.msra.mxu0 %v738
        %740 = vmatprep.subr.mxu0 0.0
        %v741 = vand.u32 %v241, 4294901760
        %v742 = vsub.f32 %v241, %v741
        %v743 = vand.u32 %v742, 4294901760
        %744 = vmatpush1.msra.mxu0 %v743
        %745 = vmatprep.subr.mxu0 0.0
        %v746 = vand.u32 %v242, 4294901760
        %v747 = vsub.f32 %v242, %v746
        %v748 = vand.u32 %v747, 4294901760
        %749 = vmatpush1.msra.mxu0 %v748
        %750 = vmatprep.subr.mxu0 0.0
        %v751 = vand.u32 %v243, 4294901760
        %v752 = vsub.f32 %v243, %v751
        %v753 = vand.u32 %v752, 4294901760
        %754 = vmatpush1.msra.mxu0 %v753
        %755 = vmatprep.subr.mxu0 0.0
        %v756 = vand.u32 %v244, 4294901760
        %v757 = vsub.f32 %v244, %v756
        %v758 = vand.u32 %v757, 4294901760
        %759 = vmatpush1.msra.mxu0 %v758
        %760 = vmatprep.subr.mxu0 0.0
        %761 = vmatpush1.msra.mxu0 0.0
        %762 = vmatprep.subr.mxu0 0.0
        %763 = vmatpush1.msra.mxu0 0.0
        %764 = vmatprep.subr.mxu0 0.0
        %765 = vmatpush1.msra.mxu0 0.0
        %766 = vmatprep.subr.mxu0 0.0
        %767 = vmatpush1.msra.mxu0 0.0
        %768 = vmatprep.subr.mxu0 0.0
        %769 = vmatpush1.msra.mxu0 0.0
        %770 = vmatprep.subr.mxu0 0.0
        %771 = vmatpush1.msra.mxu0 0.0
        %772 = vmatprep.subr.mxu0 0.0
        %773 = vmatpush1.msra.mxu0 0.0
        %774 = vmatprep.subr.mxu0 0.0
        %775 = vmatpush1.msra.mxu0 0.0
        %776 = vmatprep.subr.mxu0 0.0
        %777 = vmatpush1.msra.mxu0 0.0
        %778 = vmatprep.subr.mxu0 0.0
        %779 = vmatpush1.msra.mxu0 0.0
        %780 = vmatprep.subr.mxu0 0.0
        %781 = vmatpush1.msra.mxu0 0.0
        %782 = vmatprep.subr.mxu0 0.0
        %783 = vmatpush1.msra.mxu0 0.0
        %784 = vmatprep.subr.mxu0 0.0
        %785 = vmatpush1.msra.mxu0 0.0
        %786 = vmatprep.subr.mxu0 0.0
        %787 = vmatpush1.msra.mxu0 0.0
        %788 = vmatprep.subr.mxu0 0.0
        %789 = vmatpush1.msra.mxu0 0.0
        %790 = vmatprep.subr.mxu0 0.0
        %791 = vmatpush1.msra.mxu0 0.0
        %792 = vmatprep.mubr.f32.mxu0 0.0
        %v793 = vand.u32 %v228, 4294901760
        %794 = vmatmul.mubr.f32.gmra.mrb[0].mxu0 %v793
        %v795 = vpop.f32.mrb[0].mxu0
        %v796 = vadd.f32 %v677, %v795
        %v797 = vpop.f32.mrb[0].mxu0
        %798 = vdwg.mxu0
        %799 = vmatprep.subr.mxu0 0.0
        %v800 = vand.u32 %v229, 4294901760
        %801 = vmatpush1.msra.mxu0 %v800
        %802 = vmatprep.subr.mxu0 0.0
        %v803 = vand.u32 %v230, 4294901760
        %804 = vmatpush1.msra.mxu0 %v803
        %805 = vmatprep.subr.mxu0 0.0
        %v806 = vand.u32 %v231, 4294901760
        %807 = vmatpush1.msra.mxu0 %v806
        %808 = vmatprep.subr.mxu0 0.0
        %v809 = vand.u32 %v232, 4294901760
        %810 = vmatpush1.msra.mxu0 %v809
        %811 = vmatprep.subr.mxu0 0.0
        %v812 = vand.u32 %v233, 4294901760
        %813 = vmatpush1.msra.mxu0 %v812
        %814 = vmatprep.subr.mxu0 0.0
        %v815 = vand.u32 %v234, 4294901760
        %816 = vmatpush1.msra.mxu0 %v815
        %817 = vmatprep.subr.mxu0 0.0
        %v818 = vand.u32 %v235, 4294901760
        %819 = vmatpush1.msra.mxu0 %v818
        %820 = vmatprep.subr.mxu0 0.0
        %v821 = vand.u32 %v236, 4294901760
        %822 = vmatpush1.msra.mxu0 %v821
        %823 = vmatprep.subr.mxu0 0.0
        %v824 = vand.u32 %v237, 4294901760
        %825 = vmatpush1.msra.mxu0 %v824
        %826 = vmatprep.subr.mxu0 0.0
        %v827 = vand.u32 %v238, 4294901760
        %828 = vmatpush1.msra.mxu0 %v827
        %829 = vmatprep.subr.mxu0 0.0
        %v830 = vand.u32 %v239, 4294901760
        %831 = vmatpush1.msra.mxu0 %v830
        %832 = vmatprep.subr.mxu0 0.0
        %v833 = vand.u32 %v240, 4294901760
        %834 = vmatpush1.msra.mxu0 %v833
        %835 = vmatprep.subr.mxu0 0.0
        %v836 = vand.u32 %v241, 4294901760
        %837 = vmatpush1.msra.mxu0 %v836
        %838 = vmatprep.subr.mxu0 0.0
        %v839 = vand.u32 %v242, 4294901760
        %840 = vmatpush1.msra.mxu0 %v839
        %841 = vmatprep.subr.mxu0 0.0
        %v842 = vand.u32 %v243, 4294901760
        %843 = vmatpush1.msra.mxu0 %v842
        %844 = vmatprep.subr.mxu0 0.0
        %v845 = vand.u32 %v244, 4294901760
        %846 = vmatpush1.msra.mxu0 %v845
        %847 = vmatprep.subr.mxu0 0.0
        %848 = vmatpush1.msra.mxu0 0.0
        %849 = vmatprep.subr.mxu0 0.0
        %850 = vmatpush1.msra.mxu0 0.0
        %851 = vmatprep.subr.mxu0 0.0
        %852 = vmatpush1.msra.mxu0 0.0
        %853 = vmatprep.subr.mxu0 0.0
        %854 = vmatpush1.msra.mxu0 0.0
        %855 = vmatprep.subr.mxu0 0.0
        %856 = vmatpush1.msra.mxu0 0.0
        %857 = vmatprep.subr.mxu0 0.0
        %858 = vmatpush1.msra.mxu0 0.0
        %859 = vmatprep.subr.mxu0 0.0
        %860 = vmatpush1.msra.mxu0 0.0
        %861 = vmatprep.subr.mxu0 0.0
        %862 = vmatpush1.msra.mxu0 0.0
        %863 = vmatprep.subr.mxu0 0.0
        %864 = vmatpush1.msra.mxu0 0.0
        %865 = vmatprep.subr.mxu0 0.0
        %866 = vmatpush1.msra.mxu0 0.0
        %867 = vmatprep.subr.mxu0 0.0
        %868 = vmatpush1.msra.mxu0 0.0
        %869 = vmatprep.subr.mxu0 0.0
        %870 = vmatpush1.msra.mxu0 0.0
        %871 = vmatprep.subr.mxu0 0.0
        %872 = vmatpush1.msra.mxu0 0.0
        %873 = vmatprep.subr.mxu0 0.0
        %874 = vmatpush1.msra.mxu0 0.0
        %875 = vmatprep.subr.mxu0 0.0
        %876 = vmatpush1.msra.mxu0 0.0
        %877 = vmatprep.subr.mxu0 0.0
        %878 = vmatpush1.msra.mxu0 0.0
        %879 = vmatprep.mubr.f32.mxu0 0.0
        %v880 = vand.u32 %v228, 4294901760
        %881 = vmatmul.mubr.f32.gmra.mrb[0].mxu0 %v880
        %v882 = vpop.f32.mrb[0].mxu0
        %v883 = vadd.f32 %v796, %v882
        %v884 = vpop.f32.mrb[0].mxu0
        %885 = vdwg.mxu0
        %v886 = vsub.f32 %v228, %v883
        %v887 = vmul.f32 %v886, %v886
        %888 = vmatprep.subr.mxu0 0.0
        %v889 = vand.u32 %v229, 4294901760
        %890 = vmatpush1.msra.mxu0 %v889
        %891 = vmatprep.subr.mxu0 0.0
        %v892 = vand.u32 %v230, 4294901760
        %893 = vmatpush1.msra.mxu0 %v892
        %894 = vmatprep.subr.mxu0 0.0
        %v895 = vand.u32 %v231, 4294901760
        %896 = vmatpush1.msra.mxu0 %v895
        %897 = vmatprep.subr.mxu0 0.0
        %v898 = vand.u32 %v232, 4294901760
        %899 = vmatpush1.msra.mxu0 %v898
        %900 = vmatprep.subr.mxu0 0.0
        %v901 = vand.u32 %v233, 4294901760
        %902 = vmatpush1.msra.mxu0 %v901
        %903 = vmatprep.subr.mxu0 0.0
        %v904 = vand.u32 %v234, 4294901760
        %905 = vmatpush1.msra.mxu0 %v904
        %906 = vmatprep.subr.mxu0 0.0
        %v907 = vand.u32 %v235, 4294901760
        %908 = vmatpush1.msra.mxu0 %v907
        %909 = vmatprep.subr.mxu0 0.0
        %v910 = vand.u32 %v236, 4294901760
        %911 = vmatpush1.msra.mxu0 %v910
        %912 = vmatprep.subr.mxu0 0.0
        %v913 = vand.u32 %v237, 4294901760
        %914 = vmatpush1.msra.mxu0 %v913
        %915 = vmatprep.subr.mxu0 0.0
        %v916 = vand.u32 %v238, 4294901760
        %917 = vmatpush1.msra.mxu0 %v916
        %918 = vmatprep.subr.mxu0 0.0
        %v919 = vand.u32 %v239, 4294901760
        %920 = vmatpush1.msra.mxu0 %v919
        %921 = vmatprep.subr.mxu0 0.0
        %v922 = vand.u32 %v240, 4294901760
        %923 = vmatpush1.msra.mxu0 %v922
        %924 = vmatprep.subr.mxu0 0.0
        %v925 = vand.u32 %v241, 4294901760
        %926 = vmatpush1.msra.mxu0 %v925
        %927 = vmatprep.subr.mxu0 0.0
        %v928 = vand.u32 %v242, 4294901760
        %929 = vmatpush1.msra.mxu0 %v928
        %930 = vmatprep.subr.mxu0 0.0
        %v931 = vand.u32 %v243, 4294901760
        %932 = vmatpush1.msra.mxu0 %v931
        %933 = vmatprep.subr.mxu0 0.0
        %v934 = vand.u32 %v244, 4294901760
        %935 = vmatpush1.msra.mxu0 %v934
        %936 = vmatprep.subr.mxu0 0.0
        %937 = vmatpush1.msra.mxu0 0.0
        %938 = vmatprep.subr.mxu0 0.0
        %939 = vmatpush1.msra.mxu0 0.0
        %940 = vmatprep.subr.mxu0 0.0
        %941 = vmatpush1.msra.mxu0 0.0
        %942 = vmatprep.subr.mxu0 0.0
        %943 = vmatpush1.msra.mxu0 0.0
        %944 = vmatprep.subr.mxu0 0.0
        %945 = vmatpush1.msra.mxu0 0.0
        %946 = vmatprep.subr.mxu0 0.0
        %947 = vmatpush1.msra.mxu0 0.0
        %948 = vmatprep.subr.mxu0 0.0
        %949 = vmatpush1.msra.mxu0 0.0
        %950 = vmatprep.subr.mxu0 0.0
        %951 = vmatpush1.msra.mxu0 0.0
        %952 = vmatprep.subr.mxu0 0.0
        %953 = vmatpush1.msra.mxu0 0.0
        %954 = vmatprep.subr.mxu0 0.0
        %955 = vmatpush1.msra.mxu0 0.0
        %956 = vmatprep.subr.mxu0 0.0
        %957 = vmatpush1.msra.mxu0 0.0
        %958 = vmatprep.subr.mxu0 0.0
        %959 = vmatpush1.msra.mxu0 0.0
        %960 = vmatprep.subr.mxu0 0.0
        %961 = vmatpush1.msra.mxu0 0.0
        %962 = vmatprep.subr.mxu0 0.0
        %963 = vmatpush1.msra.mxu0 0.0
        %964 = vmatprep.subr.mxu0 0.0
        %965 = vmatpush1.msra.mxu0 0.0
        %966 = vmatprep.subr.mxu0 0.0
        %967 = vmatpush1.msra.mxu0 0.0
        %968 = vmatprep.mubr.f32.mxu0 0.0
        %v969 = vand.u32 %v887, 4294901760
        %v970 = vsub.f32 %v887, %v969
        %v971 = vand.u32 %v970, 4294901760
        %v972 = vsub.f32 %v970, %v971
        %v973 = vand.u32 %v972, 4294901760
        %974 = vmatmul.mubr.f32.gmra.mrb[0].mxu0 %v973
        %v975 = vpop.f32.mrb[0].mxu0
        %v976 = vadd.f32 1e-05, %v975
        %v977 = vpop.f32.mrb[0].mxu0
        %978 = vdwg.mxu0
        %979 = vmatprep.subr.mxu0 0.0
        %v980 = vand.u32 %v229, 4294901760
        %v981 = vsub.f32 %v229, %v980
        %v982 = vand.u32 %v981, 4294901760
        %v983 = vsub.f32 %v981, %v982
        %v984 = vand.u32 %v983, 4294901760
        %985 = vmatpush1.msra.mxu0 %v984
        %986 = vmatprep.subr.mxu0 0.0
        %v987 = vand.u32 %v230, 4294901760
        %v988 = vsub.f32 %v230, %v987
        %v989 = vand.u32 %v988, 4294901760
        %v990 = vsub.f32 %v988, %v989
        %v991 = vand.u32 %v990, 4294901760
        %992 = vmatpush1.msra.mxu0 %v991
        %993 = vmatprep.subr.mxu0 0.0
        %v994 = vand.u32 %v231, 4294901760
        %v995 = vsub.f32 %v231, %v994
        %v996 = vand.u32 %v995, 4294901760
        %v997 = vsub.f32 %v995, %v996
        %v998 = vand.u32 %v997, 4294901760
        %999 = vmatpush1.msra.mxu0 %v998
        %1000 = vmatprep.subr.mxu0 0.0
        %v1001 = vand.u32 %v232, 4294901760
        %v1002 = vsub.f32 %v232, %v1001
        %v1003 = vand.u32 %v1002, 4294901760
        %v1004 = vsub.f32 %v1002, %v1003
        %v1005 = vand.u32 %v1004, 4294901760
        %1006 = vmatpush1.msra.mxu0 %v1005
        %1007 = vmatprep.subr.mxu0 0.0
        %v1008 = vand.u32 %v233, 4294901760
        %v1009 = vsub.f32 %v233, %v1008
        %v1010 = vand.u32 %v1009, 4294901760
        %v1011 = vsub.f32 %v1009, %v1010
        %v1012 = vand.u32 %v1011, 4294901760
        %1013 = vmatpush1.msra.mxu0 %v1012
        %1014 = vmatprep.subr.mxu0 0.0
        %v1015 = vand.u32 %v234, 4294901760
        %v1016 = vsub.f32 %v234, %v1015
        %v1017 = vand.u32 %v1016, 4294901760
        %v1018 = vsub.f32 %v1016, %v1017
        %v1019 = vand.u32 %v1018, 4294901760
        %1020 = vmatpush1.msra.mxu0 %v1019
        %1021 = vmatprep.subr.mxu0 0.0
        %v1022 = vand.u32 %v235, 4294901760
        %v1023 = vsub.f32 %v235, %v1022
        %v1024 = vand.u32 %v1023, 4294901760
        %v1025 = vsub.f32 %v1023, %v1024
        %v1026 = vand.u32 %v1025, 4294901760
        %1027 = vmatpush1.msra.mxu0 %v1026
        %1028 = vmatprep.subr.mxu0 0.0
        %v1029 = vand.u32 %v236, 4294901760
        %v1030 = vsub.f32 %v236, %v1029
        %v1031 = vand.u32 %v1030, 4294901760
        %v1032 = vsub.f32 %v1030, %v1031
        %v1033 = vand.u32 %v1032, 4294901760
        %1034 = vmatpush1.msra.mxu0 %v1033
        %1035 = vmatprep.subr.mxu0 0.0
        %v1036 = vand.u32 %v237, 4294901760
        %v1037 = vsub.f32 %v237, %v1036
        %v1038 = vand.u32 %v1037, 4294901760
        %v1039 = vsub.f32 %v1037, %v1038
        %v1040 = vand.u32 %v1039, 4294901760
        %1041 = vmatpush1.msra.mxu0 %v1040
        %1042 = vmatprep.subr.mxu0 0.0
        %v1043 = vand.u32 %v238, 4294901760
        %v1044 = vsub.f32 %v238, %v1043
        %v1045 = vand.u32 %v1044, 4294901760
        %v1046 = vsub.f32 %v1044, %v1045
        %v1047 = vand.u32 %v1046, 4294901760
        %1048 = vmatpush1.msra.mxu0 %v1047
        %1049 = vmatprep.subr.mxu0 0.0
        %v1050 = vand.u32 %v239, 4294901760
        %v1051 = vsub.f32 %v239, %v1050
        %v1052 = vand.u32 %v1051, 4294901760
        %v1053 = vsub.f32 %v1051, %v1052
        %v1054 = vand.u32 %v1053, 4294901760
        %1055 = vmatpush1.msra.mxu0 %v1054
        %1056 = vmatprep.subr.mxu0 0.0
        %v1057 = vand.u32 %v240, 4294901760
        %v1058 = vsub.f32 %v240, %v1057
        %v1059 = vand.u32 %v1058, 4294901760
        %v1060 = vsub.f32 %v1058, %v1059
        %v1061 = vand.u32 %v1060, 4294901760
        %1062 = vmatpush1.msra.mxu0 %v1061
        %1063 = vmatprep.subr.mxu0 0.0
        %v1064 = vand.u32 %v241, 4294901760
        %v1065 = vsub.f32 %v241, %v1064
        %v1066 = vand.u32 %v1065, 4294901760
        %v1067 = vsub.f32 %v1065, %v1066
        %v1068 = vand.u32 %v1067, 4294901760
        %1069 = vmatpush1.msra.mxu0 %v1068
        %1070 = vmatprep.subr.mxu0 0.0
        %v1071 = vand.u32 %v242, 4294901760
        %v1072 = vsub.f32 %v242, %v1071
        %v1073 = vand.u32 %v1072, 4294901760
        %v1074 = vsub.f32 %v1072, %v1073
        %v1075 = vand.u32 %v1074, 4294901760
        %1076 = vmatpush1.msra.mxu0 %v1075
        %1077 = vmatprep.subr.mxu0 0.0
        %v1078 = vand.u32 %v243, 4294901760
        %v1079 = vsub.f32 %v243, %v1078
        %v1080 = vand.u32 %v1079, 4294901760
        %v1081 = vsub.f32 %v1079, %v1080
        %v1082 = vand.u32 %v1081, 4294901760
        %1083 = vmatpush1.msra.mxu0 %v1082
        %1084 = vmatprep.subr.mxu0 0.0
        %v1085 = vand.u32 %v244, 4294901760
        %v1086 = vsub.f32 %v244, %v1085
        %v1087 = vand.u32 %v1086, 4294901760
        %v1088 = vsub.f32 %v1086, %v1087
        %v1089 = vand.u32 %v1088, 4294901760
        %1090 = vmatpush1.msra.mxu0 %v1089
        %1091 = vmatprep.subr.mxu0 0.0
        %1092 = vmatpush1.msra.mxu0 0.0
        %1093 = vmatprep.subr.mxu0 0.0
        %1094 = vmatpush1.msra.mxu0 0.0
        %1095 = vmatprep.subr.mxu0 0.0
        %1096 = vmatpush1.msra.mxu0 0.0
        %1097 = vmatprep.subr.mxu0 0.0
        %1098 = vmatpush1.msra.mxu0 0.0
        %1099 = vmatprep.subr.mxu0 0.0
        %1100 = vmatpush1.msra.mxu0 0.0
        %1101 = vmatprep.subr.mxu0 0.0
        %1102 = vmatpush1.msra.mxu0 0.0
        %1103 = vmatprep.subr.mxu0 0.0
        %1104 = vmatpush1.msra.mxu0 0.0
        %1105 = vmatprep.subr.mxu0 0.0
        %1106 = vmatpush1.msra.mxu0 0.0
        %1107 = vmatprep.subr.mxu0 0.0
        %1108 = vmatpush1.msra.mxu0 0.0
        %1109 = vmatprep.subr.mxu0 0.0
        %1110 = vmatpush1.msra.mxu0 0.0
        %1111 = vmatprep.subr.mxu0 0.0
        %1112 = vmatpush1.msra.mxu0 0.0
        %1113 = vmatprep.subr.mxu0 0.0
        %1114 = vmatpush1.msra.mxu0 0.0
        %1115 = vmatprep.subr.mxu0 0.0
        %1116 = vmatpush1.msra.mxu0 0.0
        %1117 = vmatprep.subr.mxu0 0.0
        %1118 = vmatpush1.msra.mxu0 0.0
        %1119 = vmatprep.subr.mxu0 0.0
        %1120 = vmatpush1.msra.mxu0 0.0
        %1121 = vmatprep.subr.mxu0 0.0
        %1122 = vmatpush1.msra.mxu0 0.0
        %1123 = vmatprep.mubr.f32.mxu0 0.0
        %v1124 = vand.u32 %v887, 4294901760
        %1125 = vmatmul.mubr.f32.gmra.mrb[0].mxu0 %v1124
        %v1126 = vpop.f32.mrb[0].mxu0
        %v1127 = vadd.f32 %v976, %v1126
        %v1128 = vpop.f32.mrb[0].mxu0
        %1129 = vdwg.mxu0
        %1130 = vmatprep.subr.mxu0 0.0
        %v1131 = vand.u32 %v229, 4294901760
        %v1132 = vsub.f32 %v229, %v1131
        %1133 = vmatpush1.msra.mxu0 %v1132
        %1134 = vmatprep.subr.mxu0 0.0
        %v1135 = vand.u32 %v230, 4294901760
        %v1136 = vsub.f32 %v230, %v1135
        %1137 = vmatpush1.msra.mxu0 %v1136
        %1138 = vmatprep.subr.mxu0 0.0
        %v1139 = vand.u32 %v231, 4294901760
        %v1140 = vsub.f32 %v231, %v1139
        %1141 = vmatpush1.msra.mxu0 %v1140
        %1142 = vmatprep.subr.mxu0 0.0
        %v1143 = vand.u32 %v232, 4294901760
        %v1144 = vsub.f32 %v232, %v1143
        %1145 = vmatpush1.msra.mxu0 %v1144
        %1146 = vmatprep.subr.mxu0 0.0
        %v1147 = vand.u32 %v233, 4294901760
        %v1148 = vsub.f32 %v233, %v1147
        %1149 = vmatpush1.msra.mxu0 %v1148
        %1150 = vmatprep.subr.mxu0 0.0
        %v1151 = vand.u32 %v234, 4294901760
        %v1152 = vsub.f32 %v234, %v1151
        %1153 = vmatpush1.msra.mxu0 %v1152
        %1154 = vmatprep.subr.mxu0 0.0
        %v1155 = vand.u32 %v235, 4294901760
        %v1156 = vsub.f32 %v235, %v1155
        %1157 = vmatpush1.msra.mxu0 %v1156
        %1158 = vmatprep.subr.mxu0 0.0
        %v1159 = vand.u32 %v236, 4294901760
        %v1160 = vsub.f32 %v236, %v1159
        %1161 = vmatpush1.msra.mxu0 %v1160
        %1162 = vmatprep.subr.mxu0 0.0
        %v1163 = vand.u32 %v237, 4294901760
        %v1164 = vsub.f32 %v237, %v1163
        %1165 = vmatpush1.msra.mxu0 %v1164
        %1166 = vmatprep.subr.mxu0 0.0
        %v1167 = vand.u32 %v238, 4294901760
        %v1168 = vsub.f32 %v238, %v1167
        %1169 = vmatpush1.msra.mxu0 %v1168
        %1170 = vmatprep.subr.mxu0 0.0
        %v1171 = vand.u32 %v239, 4294901760
        %v1172 = vsub.f32 %v239, %v1171
        %1173 = vmatpush1.msra.mxu0 %v1172
        %1174 = vmatprep.subr.mxu0 0.0
        %v1175 = vand.u32 %v240, 4294901760
        %v1176 = vsub.f32 %v240, %v1175
        %1177 = vmatpush1.msra.mxu0 %v1176
        %1178 = vmatprep.subr.mxu0 0.0
        %v1179 = vand.u32 %v241, 4294901760
        %v1180 = vsub.f32 %v241, %v1179
        %1181 = vmatpush1.msra.mxu0 %v1180
        %1182 = vmatprep.subr.mxu0 0.0
        %v1183 = vand.u32 %v242, 4294901760
        %v1184 = vsub.f32 %v242, %v1183
        %1185 = vmatpush1.msra.mxu0 %v1184
        %1186 = vmatprep.subr.mxu0 0.0
        %v1187 = vand.u32 %v243, 4294901760
        %v1188 = vsub.f32 %v243, %v1187
        %1189 = vmatpush1.msra.mxu0 %v1188
        %1190 = vmatprep.subr.mxu0 0.0
        %v1191 = vand.u32 %v244, 4294901760
        %v1192 = vsub.f32 %v244, %v1191
        %1193 = vmatpush1.msra.mxu0 %v1192
        %1194 = vmatprep.subr.mxu0 0.0
        %1195 = vmatpush1.msra.mxu0 0.0
        %1196 = vmatprep.subr.mxu0 0.0
        %1197 = vmatpush1.msra.mxu0 0.0
        %1198 = vmatprep.subr.mxu0 0.0
        %1199 = vmatpush1.msra.mxu0 0.0
        %1200 = vmatprep.subr.mxu0 0.0
        %1201 = vmatpush1.msra.mxu0 0.0
        %1202 = vmatprep.subr.mxu0 0.0
        %1203 = vmatpush1.msra.mxu0 0.0
        %1204 = vmatprep.subr.mxu0 0.0
        %1205 = vmatpush1.msra.mxu0 0.0
        %1206 = vmatprep.subr.mxu0 0.0
        %1207 = vmatpush1.msra.mxu0 0.0
        %1208 = vmatprep.subr.mxu0 0.0
        %1209 = vmatpush1.msra.mxu0 0.0
        %1210 = vmatprep.subr.mxu0 0.0
        %1211 = vmatpush1.msra.mxu0 0.0
        %1212 = vmatprep.subr.mxu0 0.0
        %1213 = vmatpush1.msra.mxu0 0.0
        %1214 = vmatprep.subr.mxu0 0.0
        %1215 = vmatpush1.msra.mxu0 0.0
        %1216 = vmatprep.subr.mxu0 0.0
        %1217 = vmatpush1.msra.mxu0 0.0
        %1218 = vmatprep.subr.mxu0 0.0
        %1219 = vmatpush1.msra.mxu0 0.0
        %1220 = vmatprep.subr.mxu0 0.0
        %1221 = vmatpush1.msra.mxu0 0.0
        %1222 = vmatprep.subr.mxu0 0.0
        %1223 = vmatpush1.msra.mxu0 0.0
        %1224 = vmatprep.subr.mxu0 0.0
        %1225 = vmatpush1.msra.mxu0 0.0
        %1226 = vmatprep.mubr.f32.mxu0 0.0
        %v1227 = vand.u32 %v887, 4294901760
        %v1228 = vsub.f32 %v887, %v1227
        %1229 = vmatmul.mubr.f32.gmra.mrb[0].mxu0 %v1228
        %v1230 = vpop.f32.mrb[0].mxu0
        %v1231 = vadd.f32 %v1127, %v1230
        %v1232 = vpop.f32.mrb[0].mxu0
        %1233 = vdwg.mxu0
        %1234 = vmatprep.subr.mxu0 0.0
        %v1235 = vand.u32 %v229, 4294901760
        %1236 = vmatpush1.msra.mxu0 %v1235
        %1237 = vmatprep.subr.mxu0 0.0
        %v1238 = vand.u32 %v230, 4294901760
        %1239 = vmatpush1.msra.mxu0 %v1238
        %1240 = vmatprep.subr.mxu0 0.0
        %v1241 = vand.u32 %v231, 4294901760
        %1242 = vmatpush1.msra.mxu0 %v1241
        %1243 = vmatprep.subr.mxu0 0.0
        %v1244 = vand.u32 %v232, 4294901760
        %1245 = vmatpush1.msra.mxu0 %v1244
        %1246 = vmatprep.subr.mxu0 0.0
        %v1247 = vand.u32 %v233, 4294901760
        %1248 = vmatpush1.msra.mxu0 %v1247
        %1249 = vmatprep.subr.mxu0 0.0
        %v1250 = vand.u32 %v234, 4294901760
        %1251 = vmatpush1.msra.mxu0 %v1250
        %1252 = vmatprep.subr.mxu0 0.0
        %v1253 = vand.u32 %v235, 4294901760
        %1254 = vmatpush1.msra.mxu0 %v1253
        %1255 = vmatprep.subr.mxu0 0.0
        %v1256 = vand.u32 %v236, 4294901760
        %1257 = vmatpush1.msra.mxu0 %v1256
        %1258 = vmatprep.subr.mxu0 0.0
        %v1259 = vand.u32 %v237, 4294901760
        %1260 = vmatpush1.msra.mxu0 %v1259
        %1261 = vmatprep.subr.mxu0 0.0
        %v1262 = vand.u32 %v238, 4294901760
        %1263 = vmatpush1.msra.mxu0 %v1262
        %1264 = vmatprep.subr.mxu0 0.0
        %v1265 = vand.u32 %v239, 4294901760
        %1266 = vmatpush1.msra.mxu0 %v1265
        %1267 = vmatprep.subr.mxu0 0.0
        %v1268 = vand.u32 %v240, 4294901760
        %1269 = vmatpush1.msra.mxu0 %v1268
        %1270 = vmatprep.subr.mxu0 0.0
        %v1271 = vand.u32 %v241, 4294901760
        %1272 = vmatpush1.msra.mxu0 %v1271
        %1273 = vmatprep.subr.mxu0 0.0
        %v1274 = vand.u32 %v242, 4294901760
        %1275 = vmatpush1.msra.mxu0 %v1274
        %1276 = vmatprep.subr.mxu0 0.0
        %v1277 = vand.u32 %v243, 4294901760
        %1278 = vmatpush1.msra.mxu0 %v1277
        %1279 = vmatprep.subr.mxu0 0.0
        %v1280 = vand.u32 %v244, 4294901760
        %1281 = vmatpush1.msra.mxu0 %v1280
        %1282 = vmatprep.subr.mxu0 0.0
        %1283 = vmatpush1.msra.mxu0 0.0
        %1284 = vmatprep.subr.mxu0 0.0
        %1285 = vmatpush1.msra.mxu0 0.0
        %1286 = vmatprep.subr.mxu0 0.0
        %1287 = vmatpush1.msra.mxu0 0.0
        %1288 = vmatprep.subr.mxu0 0.0
        %1289 = vmatpush1.msra.mxu0 0.0
        %1290 = vmatprep.subr.mxu0 0.0
        %1291 = vmatpush1.msra.mxu0 0.0
        %1292 = vmatprep.subr.mxu0 0.0
        %1293 = vmatpush1.msra.mxu0 0.0
        %1294 = vmatprep.subr.mxu0 0.0
        %1295 = vmatpush1.msra.mxu0 0.0
        %1296 = vmatprep.subr.mxu0 0.0
        %1297 = vmatpush1.msra.mxu0 0.0
        %1298 = vmatprep.subr.mxu0 0.0
        %1299 = vmatpush1.msra.mxu0 0.0
        %1300 = vmatprep.subr.mxu0 0.0
        %1301 = vmatpush1.msra.mxu0 0.0
        %1302 = vmatprep.subr.mxu0 0.0
        %1303 = vmatpush1.msra.mxu0 0.0
        %1304 = vmatprep.subr.mxu0 0.0
        %1305 = vmatpush1.msra.mxu0 0.0
        %1306 = vmatprep.subr.mxu0 0.0
        %1307 = vmatpush1.msra.mxu0 0.0
        %1308 = vmatprep.subr.mxu0 0.0
        %1309 = vmatpush1.msra.mxu0 0.0
        %1310 = vmatprep.subr.mxu0 0.0
        %1311 = vmatpush1.msra.mxu0 0.0
        %1312 = vmatprep.subr.mxu0 0.0
        %1313 = vmatpush1.msra.mxu0 0.0
        %1314 = vmatprep.mubr.f32.mxu0 0.0
        %v1315 = vand.u32 %v887, 4294901760
        %v1316 = vsub.f32 %v887, %v1315
        %v1317 = vand.u32 %v1316, 4294901760
        %1318 = vmatmul.mubr.f32.gmra.mrb[0].mxu0 %v1317
        %v1319 = vpop.f32.mrb[0].mxu0
        %v1320 = vadd.f32 %v1231, %v1319
        %v1321 = vpop.f32.mrb[0].mxu0
        %1322 = vdwg.mxu0
        %1323 = vmatprep.subr.mxu0 0.0
        %v1324 = vand.u32 %v229, 4294901760
        %v1325 = vsub.f32 %v229, %v1324
        %v1326 = vand.u32 %v1325, 4294901760
        %1327 = vmatpush1.msra.mxu0 %v1326
        %1328 = vmatprep.subr.mxu0 0.0
        %v1329 = vand.u32 %v230, 4294901760
        %v1330 = vsub.f32 %v230, %v1329
        %v1331 = vand.u32 %v1330, 4294901760
        %1332 = vmatpush1.msra.mxu0 %v1331
        %1333 = vmatprep.subr.mxu0 0.0
        %v1334 = vand.u32 %v231, 4294901760
        %v1335 = vsub.f32 %v231, %v1334
        %v1336 = vand.u32 %v1335, 4294901760
        %1337 = vmatpush1.msra.mxu0 %v1336
        %1338 = vmatprep.subr.mxu0 0.0
        %v1339 = vand.u32 %v232, 4294901760
        %v1340 = vsub.f32 %v232, %v1339
        %v1341 = vand.u32 %v1340, 4294901760
        %1342 = vmatpush1.msra.mxu0 %v1341
        %1343 = vmatprep.subr.mxu0 0.0
        %v1344 = vand.u32 %v233, 4294901760
        %v1345 = vsub.f32 %v233, %v1344
        %v1346 = vand.u32 %v1345, 4294901760
        %1347 = vmatpush1.msra.mxu0 %v1346
        %1348 = vmatprep.subr.mxu0 0.0
        %v1349 = vand.u32 %v234, 4294901760
        %v1350 = vsub.f32 %v234, %v1349
        %v1351 = vand.u32 %v1350, 4294901760
        %1352 = vmatpush1.msra.mxu0 %v1351
        %1353 = vmatprep.subr.mxu0 0.0
        %v1354 = vand.u32 %v235, 4294901760
        %v1355 = vsub.f32 %v235, %v1354
        %v1356 = vand.u32 %v1355, 4294901760
        %1357 = vmatpush1.msra.mxu0 %v1356
        %1358 = vmatprep.subr.mxu0 0.0
        %v1359 = vand.u32 %v236, 4294901760
        %v1360 = vsub.f32 %v236, %v1359
        %v1361 = vand.u32 %v1360, 4294901760
        %1362 = vmatpush1.msra.mxu0 %v1361
        %1363 = vmatprep.subr.mxu0 0.0
        %v1364 = vand.u32 %v237, 4294901760
        %v1365 = vsub.f32 %v237, %v1364
        %v1366 = vand.u32 %v1365, 4294901760
        %1367 = vmatpush1.msra.mxu0 %v1366
        %1368 = vmatprep.subr.mxu0 0.0
        %v1369 = vand.u32 %v238, 4294901760
        %v1370 = vsub.f32 %v238, %v1369
        %v1371 = vand.u32 %v1370, 4294901760
        %1372 = vmatpush1.msra.mxu0 %v1371
        %1373 = vmatprep.subr.mxu0 0.0
        %v1374 = vand.u32 %v239, 4294901760
        %v1375 = vsub.f32 %v239, %v1374
        %v1376 = vand.u32 %v1375, 4294901760
        %1377 = vmatpush1.msra.mxu0 %v1376
        %1378 = vmatprep.subr.mxu0 0.0
        %v1379 = vand.u32 %v240, 4294901760
        %v1380 = vsub.f32 %v240, %v1379
        %v1381 = vand.u32 %v1380, 4294901760
        %1382 = vmatpush1.msra.mxu0 %v1381
        %1383 = vmatprep.subr.mxu0 0.0
        %v1384 = vand.u32 %v241, 4294901760
        %v1385 = vsub.f32 %v241, %v1384
        %v1386 = vand.u32 %v1385, 4294901760
        %1387 = vmatpush1.msra.mxu0 %v1386
        %1388 = vmatprep.subr.mxu0 0.0
        %v1389 = vand.u32 %v242, 4294901760
        %v1390 = vsub.f32 %v242, %v1389
        %v1391 = vand.u32 %v1390, 4294901760
        %1392 = vmatpush1.msra.mxu0 %v1391
        %1393 = vmatprep.subr.mxu0 0.0
        %v1394 = vand.u32 %v243, 4294901760
        %v1395 = vsub.f32 %v243, %v1394
        %v1396 = vand.u32 %v1395, 4294901760
        %1397 = vmatpush1.msra.mxu0 %v1396
        %1398 = vmatprep.subr.mxu0 0.0
        %v1399 = vand.u32 %v244, 4294901760
        %v1400 = vsub.f32 %v244, %v1399
        %v1401 = vand.u32 %v1400, 4294901760
        %1402 = vmatpush1.msra.mxu0 %v1401
        %1403 = vmatprep.subr.mxu0 0.0
        %1404 = vmatpush1.msra.mxu0 0.0
        %1405 = vmatprep.subr.mxu0 0.0
        %1406 = vmatpush1.msra.mxu0 0.0
        %1407 = vmatprep.subr.mxu0 0.0
        %1408 = vmatpush1.msra.mxu0 0.0
        %1409 = vmatprep.subr.mxu0 0.0
        %1410 = vmatpush1.msra.mxu0 0.0
        %1411 = vmatprep.subr.mxu0 0.0
        %1412 = vmatpush1.msra.mxu0 0.0
        %1413 = vmatprep.subr.mxu0 0.0
        %1414 = vmatpush1.msra.mxu0 0.0
        %1415 = vmatprep.subr.mxu0 0.0
        %1416 = vmatpush1.msra.mxu0 0.0
        %1417 = vmatprep.subr.mxu0 0.0
        %1418 = vmatpush1.msra.mxu0 0.0
        %1419 = vmatprep.subr.mxu0 0.0
        %1420 = vmatpush1.msra.mxu0 0.0
        %1421 = vmatprep.subr.mxu0 0.0
        %1422 = vmatpush1.msra.mxu0 0.0
        %1423 = vmatprep.subr.mxu0 0.0
        %1424 = vmatpush1.msra.mxu0 0.0
        %1425 = vmatprep.subr.mxu0 0.0
        %1426 = vmatpush1.msra.mxu0 0.0
        %1427 = vmatprep.subr.mxu0 0.0
        %1428 = vmatpush1.msra.mxu0 0.0
        %1429 = vmatprep.subr.mxu0 0.0
        %1430 = vmatpush1.msra.mxu0 0.0
        %1431 = vmatprep.subr.mxu0 0.0
        %1432 = vmatpush1.msra.mxu0 0.0
        %1433 = vmatprep.subr.mxu0 0.0
        %1434 = vmatpush1.msra.mxu0 0.0
        %1435 = vmatprep.mubr.f32.mxu0 0.0
        %v1436 = vand.u32 %v887, 4294901760
        %1437 = vmatmul.mubr.f32.gmra.mrb[0].mxu0 %v1436
        %v1438 = vpop.f32.mrb[0].mxu0
        %v1439 = vadd.f32 %v1320, %v1438
        %v1440 = vpop.f32.mrb[0].mxu0
        %1441 = vdwg.mxu0
        %1442 = vmatprep.subr.mxu0 0.0
        %v1443 = vand.u32 %v229, 4294901760
        %1444 = vmatpush1.msra.mxu0 %v1443
        %1445 = vmatprep.subr.mxu0 0.0
        %v1446 = vand.u32 %v230, 4294901760
        %1447 = vmatpush1.msra.mxu0 %v1446
        %1448 = vmatprep.subr.mxu0 0.0
        %v1449 = vand.u32 %v231, 4294901760
        %1450 = vmatpush1.msra.mxu0 %v1449
        %1451 = vmatprep.subr.mxu0 0.0
        %v1452 = vand.u32 %v232, 4294901760
        %1453 = vmatpush1.msra.mxu0 %v1452
        %1454 = vmatprep.subr.mxu0 0.0
        %v1455 = vand.u32 %v233, 4294901760
        %1456 = vmatpush1.msra.mxu0 %v1455
        %1457 = vmatprep.subr.mxu0 0.0
        %v1458 = vand.u32 %v234, 4294901760
        %1459 = vmatpush1.msra.mxu0 %v1458
        %1460 = vmatprep.subr.mxu0 0.0
        %v1461 = vand.u32 %v235, 4294901760
        %1462 = vmatpush1.msra.mxu0 %v1461
        %1463 = vmatprep.subr.mxu0 0.0
        %v1464 = vand.u32 %v236, 4294901760
        %1465 = vmatpush1.msra.mxu0 %v1464
        %1466 = vmatprep.subr.mxu0 0.0
        %v1467 = vand.u32 %v237, 4294901760
        %1468 = vmatpush1.msra.mxu0 %v1467
        %1469 = vmatprep.subr.mxu0 0.0
        %v1470 = vand.u32 %v238, 4294901760
        %1471 = vmatpush1.msra.mxu0 %v1470
        %1472 = vmatprep.subr.mxu0 0.0
        %v1473 = vand.u32 %v239, 4294901760
        %1474 = vmatpush1.msra.mxu0 %v1473
        %1475 = vmatprep.subr.mxu0 0.0
        %v1476 = vand.u32 %v240, 4294901760
        %1477 = vmatpush1.msra.mxu0 %v1476
        %1478 = vmatprep.subr.mxu0 0.0
        %v1479 = vand.u32 %v241, 4294901760
        %1480 = vmatpush1.msra.mxu0 %v1479
        %1481 = vmatprep.subr.mxu0 0.0
        %v1482 = vand.u32 %v242, 4294901760
        %1483 = vmatpush1.msra.mxu0 %v1482
        %1484 = vmatprep.subr.mxu0 0.0
        %v1485 = vand.u32 %v243, 4294901760
        %1486 = vmatpush1.msra.mxu0 %v1485
        %1487 = vmatprep.subr.mxu0 0.0
        %v1488 = vand.u32 %v244, 4294901760
        %1489 = vmatpush1.msra.mxu0 %v1488
        %1490 = vmatprep.subr.mxu0 0.0
        %1491 = vmatpush1.msra.mxu0 0.0
        %1492 = vmatprep.subr.mxu0 0.0
        %1493 = vmatpush1.msra.mxu0 0.0
        %1494 = vmatprep.subr.mxu0 0.0
        %1495 = vmatpush1.msra.mxu0 0.0
        %1496 = vmatprep.subr.mxu0 0.0
        %1497 = vmatpush1.msra.mxu0 0.0
        %1498 = vmatprep.subr.mxu0 0.0
        %1499 = vmatpush1.msra.mxu0 0.0
        %1500 = vmatprep.subr.mxu0 0.0
        %1501 = vmatpush1.msra.mxu0 0.0
        %1502 = vmatprep.subr.mxu0 0.0
        %1503 = vmatpush1.msra.mxu0 0.0
        %1504 = vmatprep.subr.mxu0 0.0
        %1505 = vmatpush1.msra.mxu0 0.0
        %1506 = vmatprep.subr.mxu0 0.0
        %1507 = vmatpush1.msra.mxu0 0.0
        %1508 = vmatprep.subr.mxu0 0.0
        %1509 = vmatpush1.msra.mxu0 0.0
        %1510 = vmatprep.subr.mxu0 0.0
        %1511 = vmatpush1.msra.mxu0 0.0
        %1512 = vmatprep.subr.mxu0 0.0
        %1513 = vmatpush1.msra.mxu0 0.0
        %1514 = vmatprep.subr.mxu0 0.0
        %1515 = vmatpush1.msra.mxu0 0.0
        %1516 = vmatprep.subr.mxu0 0.0
        %1517 = vmatpush1.msra.mxu0 0.0
        %1518 = vmatprep.subr.mxu0 0.0
        %1519 = vmatpush1.msra.mxu0 0.0
        %1520 = vmatprep.subr.mxu0 0.0
        %1521 = vmatpush1.msra.mxu0 0.0
        %1522 = vmatprep.mubr.f32.mxu0 0.0
        %v1523 = vand.u32 %v887, 4294901760
        %1524 = vmatmul.mubr.f32.gmra.mrb[0].mxu0 %v1523
        %v1525 = vpop.f32.mrb[0].mxu0
        %v1526 = vadd.f32 %v1439, %v1525
        %v1527 = vpop.f32.mrb[0].mxu0
        %1528 = vdwg.mxu0
        %v1529 = vrsqrt.pop %v1526
        %v1530 = vmul.f32 %v886, %v1529
        %v1531 = vld [vmem:[%s1] sm:$0x1]
        %v1533 = vlaneseq
        %v1534 = vshrl.u32 %v1533, 7
        %v1535 = vsub.s32 0, %v1534
        %v1536 = vrot.slane %v1531, %v1535
        %v1538 = vmul.f32 %v1530, %v1536
        %v1539 = vld [vmem:[%s2] sm:$0x1]
        %v1541 = vlaneseq
        %v1542 = vshrl.u32 %v1541, 7
        %v1543 = vsub.s32 0, %v1542
        %v1544 = vrot.slane %v1539, %v1543
        %v1546 = vadd.f32 %v1538, %v1544
        %1547 = vst [vmem:[%s227] sm:$0xff] %v1546
        %s1548 = sand.u32 %s119, 1
        %s1549 = scalar_lea.sflag [#allocation4], %s1548
        %s1550 = sand.u32 %s119, 1
        %s1551 = smul.addr %s1550, 8
        %s1552 = scalar_lea.vmem [#allocation7], %s1551
        // Predicated region
        $region45: #{tpu_custom_call.1} parent=35 // pred_check
          %p1553 = pneg %p129
        $region46: #{tpu_custom_call.1} parent=35 // pred_check_branch
          %1555 = sbr.rel (%p1553) target = $region48
        $region47: #{tpu_custom_call.1} parent=35 // pred_region
          %s1557 = ssub.s32 128, 128
          %1558 = vsyncadd %s1549, %s1557
          %s1559 = smul.addr %s22, 128
          %s1560 = scalar_lea.hbm %s4, %s1559
          %s1562 = sshll.u32 %s1552, 4
          %s1563 = int_to_ptr.vmem [resolvable:$true] %s1562
          %1565 = dma.vmem_to_hbm [thread:$0]  %s1563, 128, %s1560, %s1549
        $region48: #{tpu_custom_call.1} parent=35 // pred_fallthru
          _
      $region36: #{tpu_custom_call.1} parent=5 // pred_fallthru
        _
      %p1566 = scmp.le.s32.totalorder 2, %s17
      // Predicated region
      $region49: #{tpu_custom_call.1} parent=5 // pred_check
        %p1567 = pneg %p1566
      $region50: #{tpu_custom_call.1} parent=5 // pred_check_branch
        %1569 = sbr.rel (%p1567) target = $region52
      $region51: #{tpu_custom_call.1} parent=5 // pred_region
        %s1570 = ssub.s32 %s17, 2
        // Predicated region
        $region53: #{tpu_custom_call.1} parent=51 // pred_check
          %p1571 = pneg %p135
        $region54: #{tpu_custom_call.1} parent=51 // pred_check_branch
          %1573 = sbr.rel (%p1571) target = $region56
        $region55: #{tpu_custom_call.1} parent=51 // pred_region
          %s1574 = sand.u32 %s120, 1
          %s1575 = scalar_lea.sflag [#allocation4], %s1574
          %s1576 = sand.u32 %s120, 1
          %s1577 = smul.addr %s1576, 8
          %s1578 = scalar_lea.vmem [#allocation7], %s1577
          %1579 = dma.done %s1575, 128
        $region56: #{tpu_custom_call.1} parent=51 // pred_fallthru
          _
      $region52: #{tpu_custom_call.1} parent=5 // pred_fallthru
        _
    $region6: #{tpu_custom_call.1} parent=1 // loop_footer
      %s21 = sadd.s32 1, %s17
    $region7: #{tpu_custom_call.1} parent=1 // loop_footer_branch
      %16 = sbr.rel target = $region3
    $region8: #{tpu_custom_call.1} parent=1 // loop_exit
      _
    %1580 = vsyncpa [#allocation3], 1
    %s1581 = scalar_lea.sflag [#allocation3], 1
    %1582 = vsyncpa %s1581, 1
    %1583 = vsyncpa [#allocation6], 1
    %1584 = vsyncpa [#allocation4], 1
    %s1585 = scalar_lea.sflag [#allocation4], 1
    %1586 = vsyncpa %s1585, 1

</llo_original>
